<compile_context>
chip_gen: v6e
topology: v6e:2x2x1
jax: 0.10.0
libtpu: 0.0.40
codegen_flags: <defaults>
</compile_context>

<pallas_src>
import jax
import jax.numpy as jnp
from jax.experimental import pallas as pl
from jax.experimental.pallas import tpu as pltpu


def _round_up(x, m):
    return (x + m - 1) // m * m


def _default_batch_tile(B):
    """Per-generation batch tile:
      * v7x: 2 TensorCores/chip, 64 MiB VMEM/TC -> smaller tiles so the
        'parallel' grid gives each core >=2 pipelined steps.
      * v5e/v6e: single TC, 128 MiB VMEM -> one big step amortizes the
        ~0.35us/step pipeline overhead and the resident weights."""
    try:
        kind = jax.devices()[0].device_kind.lower()
    except Exception:  # pragma: no cover - defensive
        kind = ""
    tile = 128 if "v7" in kind else 2048
    return max(16, min(_round_up(tile, 16), _round_up(B, 16)))


def mlp_kernel(x_ref, w1_ref, b1_ref, w2_ref, b2_ref, w3_ref, b3_ref, o_ref):
    # fc1 + ReLU   (dropout1 == identity in eval mode)
    x = x_ref[...]  # [tb, D] bf16
    h1 = jnp.dot(x, w1_ref[...], preferred_element_type=jnp.float32) + b1_ref[...]
    h1 = jnp.maximum(h1, 0.0).astype(jnp.bfloat16)

    # fc2 + ReLU   (dropout2 == identity in eval mode)
    h2 = jnp.dot(h1, w2_ref[...], preferred_element_type=jnp.float32) + b2_ref[...]
    h2 = jnp.maximum(h2, 0.0).astype(jnp.bfloat16)

    # fc3 (no activation); output dim is padded to 128 -> unmasked vst
    out = jnp.dot(h2, w3_ref[...], preferred_element_type=jnp.float32) + b3_ref[...]
    o_ref[...] = out.astype(o_ref.dtype)


def prepare_params(params, *, lane=128):
    """One-time (hoisted) weight prep: cast weights to bf16, biases to f32,
    and pad ONLY the fc3 output dim to a multiple of 128 so the HBM store is
    lane-dense.  Contraction dims (D, H1, H2) keep their natural sizes.
    Returns (prepared_param_dict, real_output_features)."""
    w1, b1, w2, b2, w3, b3 = (params[k] for k in ("w1", "b1", "w2", "b2", "w3", "b3"))
    out_features = w3.shape[1]
    out_padded = _round_up(out_features, lane)

    def pad_cols(a, cols):
        return jnp.pad(a, ((0, 0), (0, cols - a.shape[1])))

    prepped = dict(
        w1=jnp.asarray(w1, jnp.bfloat16),
        b1=jnp.asarray(b1, jnp.float32),
        w2=jnp.asarray(w2, jnp.bfloat16),
        b2=jnp.asarray(b2, jnp.float32),
        w3=jnp.asarray(pad_cols(w3, out_padded), jnp.bfloat16),
        b3=jnp.asarray(pad_cols(b3, out_padded), jnp.float32),
    )
    return prepped, out_features


def mlp_forward(x, prepped, out_features, *, batch_tile=None):
    """x: [B, D] float32.  prepped: output of prepare_params()."""
    B, D = x.shape
    w1, b1, w2, b2, w3, b3 = (prepped[k] for k in ("w1", "b1", "w2", "b2", "w3", "b3"))
    H1, H2, OUTp = w1.shape[1], w2.shape[1], w3.shape[1]
    OUT = out_features

    tb = batch_tile if batch_tile is not None else _default_batch_tile(B)
    tb = max(16, min(_round_up(tb, 16), _round_up(B, 16)))  # 16 = bf16 sublane tile
    Bp = _round_up(B, tb)

    xb = x.astype(jnp.bfloat16)
    if Bp != B:
        xb = jnp.pad(xb, ((0, Bp - B), (0, 0)))

    grid = (Bp // tb,)

    # Whole array resident in VMEM, single-buffered (constant operands don't
    # need the default double-buffered pipeline allocation).
    resident = pl.BlockSpec(memory_space=pltpu.MemorySpace.VMEM)

    # VMEM budget: resident bf16 weights + f32 biases, double-buffered bf16
    # x tile + f32 out tile, in-flight f32 intermediates, compiler headroom.
    weight_bytes = 2 * (D * H1 + H1 * H2 + H2 * OUTp) + 4 * (H1 + H2 + OUTp)
    tile_bytes = 2 * (tb * D * 2) + 2 * (tb * OUTp * 4)
    interm_bytes = 2 * (4 * tb * (H1 + H2 + OUTp))
    need = weight_bytes + tile_bytes + interm_bytes + (4 << 20)
    vmem_cap = 48 << 20  # leave slack under v7x's 64 MiB/TC physical VMEM
    if need > vmem_cap:
        # TODO(synk): for MLPs whose weights don't fit resident in VMEM,
        # pipeline the weights over an extra grid axis (emit_pipeline) instead.
        raise ValueError("MLP weights/tiles do not fit the resident-VMEM pattern")
    vmem_limit = int(max(8 << 20, need))

    # Advisory cost from the *unpadded* dims (don't count zero-padding work).
    cost = pl.CostEstimate(
        flops=2 * B * (D * H1 + H1 * H2 + H2 * OUT),
        transcendentals=0,
        bytes_accessed=int(B * D * 2
                           + 2 * (D * H1 + H1 * H2 + H2 * OUT)
                           + 4 * (H1 + H2 + OUT)
                           + B * OUT * 4),
    )

    out_padded = pl.pallas_call(
        mlp_kernel,
        out_shape=jax.ShapeDtypeStruct((Bp, OUTp), jnp.float32),
        grid_spec=pltpu.PrefetchScalarGridSpec(
            num_scalar_prefetch=0,
            grid=grid,
            in_specs=[
                pl.BlockSpec((tb, D), lambda i: (i, 0)),  # x tile (pipelined)
                resident, resident,                        # w1, b1
                resident, resident,                        # w2, b2
                resident, resident,                        # w3, b3
            ],
            out_specs=pl.BlockSpec((tb, OUTp), lambda i: (i, 0)),
        ),
        compiler_params=pltpu.CompilerParams(
            dimension_semantics=("parallel",),
            vmem_limit_bytes=vmem_limit,
        ),
        cost_estimate=cost,
    )(xb, w1, b1, w2, b2, w3, b3)

    return out_padded[:B, :OUT]


def init_params(key, input_size, output_size):
    """Deterministic init (PyTorch Linear-style uniform bounds), weights stored
    as [in, out]."""
    def linear(key, fan_in, fan_out):
        kw, kb = jax.random.split(key)
        bound = 1.0 / (fan_in ** 0.5)
        w = jax.random.uniform(kw, (fan_in, fan_out), jnp.float32, -bound, bound)
        b = jax.random.uniform(kb, (1, fan_out), jnp.float32, -bound, bound)
        return w, b

    k1, k2, k3 = jax.random.split(key, 3)
    h1 = input_size // 2
    h2 = input_size // 4
    w1, b1 = linear(k1, input_size, h1)
    w2, b2 = linear(k2, h1, h2)
    w3, b3 = linear(k3, h2, output_size)
    return dict(w1=w1, b1=b1, w2=w2, b2=b2, w3=w3, b3=b3)


def mlp_reference(x, p):
    """Reference matching the kernel's numerics (bf16 operands, f32 accum)."""
    bf = lambda a: a.astype(jnp.bfloat16).astype(jnp.float32)
    dot = lambda a, b: jnp.dot(a, b, precision=jax.lax.Precision.HIGHEST)
    h1 = jnp.maximum(dot(bf(x), bf(p["w1"])) + p["b1"], 0.0)
    h2 = jnp.maximum(dot(bf(h1), bf(p["w2"])) + p["b2"], 0.0)
    return dot(bf(h2), bf(p["w3"])) + p["b3"]


if __name__ == "__main__":
    key = jax.random.PRNGKey(0)
    kx, kp = jax.random.split(key)

    batch = 512          # enough rows for a multi-step grid on v7x
    input_size = 64
    output_size = 8

    x = jax.random.normal(kx, (batch, input_size), jnp.float32)
    params = init_params(kp, input_size, output_size)

    # One-time weight prep (hoisted out of the forward call).
    prepped, out_features = prepare_params(params)

    out = mlp_forward(x, prepped, out_features)
    out = jax.block_until_ready(out)

    ref = mlp_reference(x, params)
    assert out.shape == (batch, output_size)
    max_err = float(jnp.max(jnp.abs(out - ref)))
    assert jnp.allclose(out, ref, atol=1e-3, rtol=1e-3), f"mismatch vs reference: {max_err}"

    print("KERNEL_OK")
</pallas_src>

<mosaic_0001>
module attributes {stable_mosaic.version = 11 : i64} {
  func.func @mlp_kernel(%arg0: i32, %arg1: memref<512x64xbf16, #tpu.memory_space<vmem>>, %arg2: memref<64x32xbf16, #tpu.memory_space<vmem>>, %arg3: memref<1x32xf32, #tpu.memory_space<vmem>>, %arg4: memref<32x16xbf16, #tpu.memory_space<vmem>>, %arg5: memref<1x16xf32, #tpu.memory_space<vmem>>, %arg6: memref<16x128xbf16, #tpu.memory_space<vmem>>, %arg7: memref<1x128xf32, #tpu.memory_space<vmem>>, %arg8: memref<512x128xf32, #tpu.memory_space<vmem>>) attributes {dimension_semantics = [#tpu.dimension_semantics<parallel>], iteration_bounds = array<i64: 1>, scalar_prefetch = 0 : i64, scratch_operands = 0 : i64, tpu.core_type = #tpu.core_type<tc>, window_params = [{transform_indices = @transform_0, window_bounds = array<i64: 512, 64>}, {pipeline_mode = #tpu.pipeline_mode<synchronous>, transform_indices = @transform_1, window_bounds = array<i64: 64, 32>}, {pipeline_mode = #tpu.pipeline_mode<synchronous>, transform_indices = @transform_2, window_bounds = array<i64: 1, 32>}, {pipeline_mode = #tpu.pipeline_mode<synchronous>, transform_indices = @transform_3, window_bounds = array<i64: 32, 16>}, {pipeline_mode = #tpu.pipeline_mode<synchronous>, transform_indices = @transform_4, window_bounds = array<i64: 1, 16>}, {pipeline_mode = #tpu.pipeline_mode<synchronous>, transform_indices = @transform_5, window_bounds = array<i64: 16, 128>}, {pipeline_mode = #tpu.pipeline_mode<synchronous>, transform_indices = @transform_6, window_bounds = array<i64: 1, 128>}, {transform_indices = @transform_7, window_bounds = array<i64: 512, 128>}]} {
    %c0 = arith.constant 0 : index
    %c0_0 = arith.constant 0 : index
    %0 = vector.load %arg1[%c0, %c0_0] : memref<512x64xbf16, #tpu.memory_space<vmem>>, vector<512x64xbf16>
    %c0_1 = arith.constant 0 : index
    %c0_2 = arith.constant 0 : index
    %1 = vector.load %arg2[%c0_1, %c0_2] : memref<64x32xbf16, #tpu.memory_space<vmem>>, vector<64x32xbf16>
    %cst = arith.constant dense<0.000000e+00> : vector<512x32xf32>
    %2 = tpu.matmul %0, %1, %cst {dimension_numbers = #tpu.dot_dimension_numbers<[1], [0], [0], [1], [0, 0, 1, 1], [], []>} : vector<512x64xbf16>, vector<64x32xbf16>, vector<512x32xf32> -> vector<512x32xf32>
    %c0_3 = arith.constant 0 : index
    %c0_4 = arith.constant 0 : index
    %3 = vector.load %arg3[%c0_3, %c0_4] : memref<1x32xf32, #tpu.memory_space<vmem>>, vector<1x32xf32>
    %4 = vector.broadcast %3 : vector<1x32xf32> to vector<512x32xf32>
    %5 = arith.addf %2, %4 : vector<512x32xf32>
    %cst_5 = arith.constant 0.000000e+00 : f32
    %6 = vector.broadcast %cst_5 : f32 to vector<512x32xf32>
    %7 = arith.maximumf %5, %6 : vector<512x32xf32>
    %8 = arith.truncf %7 : vector<512x32xf32> to vector<512x32xbf16>
    %c0_6 = arith.constant 0 : index
    %c0_7 = arith.constant 0 : index
    %9 = vector.load %arg4[%c0_6, %c0_7] : memref<32x16xbf16, #tpu.memory_space<vmem>>, vector<32x16xbf16>
    %cst_8 = arith.constant dense<0.000000e+00> : vector<512x16xf32>
    %10 = tpu.matmul %8, %9, %cst_8 {dimension_numbers = #tpu.dot_dimension_numbers<[1], [0], [0], [1], [0, 0, 1, 1], [], []>} : vector<512x32xbf16>, vector<32x16xbf16>, vector<512x16xf32> -> vector<512x16xf32>
    %c0_9 = arith.constant 0 : index
    %c0_10 = arith.constant 0 : index
    %11 = vector.load %arg5[%c0_9, %c0_10] : memref<1x16xf32, #tpu.memory_space<vmem>>, vector<1x16xf32>
    %12 = vector.broadcast %11 : vector<1x16xf32> to vector<512x16xf32>
    %13 = arith.addf %10, %12 : vector<512x16xf32>
    %cst_11 = arith.constant 0.000000e+00 : f32
    %14 = vector.broadcast %cst_11 : f32 to vector<512x16xf32>
    %15 = arith.maximumf %13, %14 : vector<512x16xf32>
    %16 = arith.truncf %15 : vector<512x16xf32> to vector<512x16xbf16>
    %c0_12 = arith.constant 0 : index
    %c0_13 = arith.constant 0 : index
    %17 = vector.load %arg6[%c0_12, %c0_13] : memref<16x128xbf16, #tpu.memory_space<vmem>>, vector<16x128xbf16>
    %cst_14 = arith.constant dense<0.000000e+00> : vector<512x128xf32>
    %18 = tpu.matmul %16, %17, %cst_14 {dimension_numbers = #tpu.dot_dimension_numbers<[1], [0], [0], [1], [0, 0, 1, 1], [], []>} : vector<512x16xbf16>, vector<16x128xbf16>, vector<512x128xf32> -> vector<512x128xf32>
    %c0_15 = arith.constant 0 : index
    %c0_16 = arith.constant 0 : index
    %19 = vector.load %arg7[%c0_15, %c0_16] : memref<1x128xf32, #tpu.memory_space<vmem>>, vector<1x128xf32>
    %20 = vector.broadcast %19 : vector<1x128xf32> to vector<512x128xf32>
    %21 = arith.addf %18, %20 : vector<512x128xf32>
    %c0_17 = arith.constant 0 : index
    %c0_18 = arith.constant 0 : index
    %22 = vector.load %arg8[%c0_17, %c0_18] : memref<512x128xf32, #tpu.memory_space<vmem>>, vector<512x128xf32>
    tpu.vector_store %arg8[%c0_17, %c0_18], %21 {strides = array<i32>} : memref<512x128xf32, #tpu.memory_space<vmem>>, vector<512x128xf32>,
    return
  }
  func.func @transform_0(%arg0: i32) -> (i32, i32) {
    %c0_i32 = arith.constant 0 : i32
    %c0_i32_0 = arith.constant 0 : i32
    return %arg0, %c0_i32 : i32, i32
  }
  func.func @transform_1(%arg0: i32) -> (i32, i32) {
    %c0_i32 = arith.constant 0 : i32
    %c0_i32_0 = arith.constant 0 : i32
    %c0_i32_1 = arith.constant 0 : i32
    return %c0_i32, %c0_i32_0 : i32, i32
  }
  func.func @transform_2(%arg0: i32) -> (i32, i32) {
    %c0_i32 = arith.constant 0 : i32
    %c0_i32_0 = arith.constant 0 : i32
    %c0_i32_1 = arith.constant 0 : i32
    return %c0_i32, %c0_i32_0 : i32, i32
  }
  func.func @transform_3(%arg0: i32) -> (i32, i32) {
    %c0_i32 = arith.constant 0 : i32
    %c0_i32_0 = arith.constant 0 : i32
    %c0_i32_1 = arith.constant 0 : i32
    return %c0_i32, %c0_i32_0 : i32, i32
  }
  func.func @transform_4(%arg0: i32) -> (i32, i32) {
    %c0_i32 = arith.constant 0 : i32
    %c0_i32_0 = arith.constant 0 : i32
    %c0_i32_1 = arith.constant 0 : i32
    return %c0_i32, %c0_i32_0 : i32, i32
  }
  func.func @transform_5(%arg0: i32) -> (i32, i32) {
    %c0_i32 = arith.constant 0 : i32
    %c0_i32_0 = arith.constant 0 : i32
    %c0_i32_1 = arith.constant 0 : i32
    return %c0_i32, %c0_i32_0 : i32, i32
  }
  func.func @transform_6(%arg0: i32) -> (i32, i32) {
    %c0_i32 = arith.constant 0 : i32
    %c0_i32_0 = arith.constant 0 : i32
    %c0_i32_1 = arith.constant 0 : i32
    return %c0_i32, %c0_i32_0 : i32, i32
  }
  func.func @transform_7(%arg0: i32) -> (i32, i32) {
    %c0_i32 = arith.constant 0 : i32
    %c0_i32_0 = arith.constant 0 : i32
    return %arg0, %c0_i32 : i32, i32
  }
}

</mosaic_0001>

<llo_original>
// kernel: tpu_custom_call.1
$region0: #{tpu_custom_call.1}
  #allocation0 [shape = 'u32[]', space=smem, size = 0x4, offset = 0x4, fixed_abs, tag = 'smem constant byte address 0x4 - core index']
  #allocation1 [shape = 'u32[144,128]{1,0:T(1,128)}', space=vmem, size = 0x12000, scoped, tag = 'internal scratch']
  %s0 = inlined_call_operand.vmem [shape: bf16[512,64], index: 0, kind: input, shape index: {}]
  %s1 = inlined_call_operand.vmem [shape: bf16[64,32], index: 1, kind: input, shape index: {}]
  %s2 = inlined_call_operand.vmem [shape: f32[1,32], index: 2, kind: input, shape index: {}]
  %s3 = inlined_call_operand.vmem [shape: bf16[32,16], index: 3, kind: input, shape index: {}]
  %s4 = inlined_call_operand.vmem [shape: f32[1,16], index: 4, kind: input, shape index: {}]
  %s5 = inlined_call_operand.vmem [shape: bf16[16,128], index: 5, kind: input, shape index: {}]
  %s6 = inlined_call_operand.vmem [shape: f32[1,128], index: 6, kind: input, shape index: {}]
  %s7 = inlined_call_operand.hbm [shape: f32[512,128], index: 7, kind: output, shape index: {}]
  %s8 = sld [smem:[#allocation0]]
  $region38: #{tpu_custom_call.1} parent=0
    _
  %s10 = ssub.s32 1, %s8
  %s11 = scalar_select 0, %s10, %s8
  $region1: #{tpu_custom_call.1} parent=0
    #allocation2 [shape = 'u8[262144]{0}', space=vmem, size = 0x40000, scoped, tag = 'output window, operand 0, single buffered']
    #allocation3 [shape = 's32[1]{0}', space=sflag, size = 0x4, scoped, tag = 'scoped memory for tpu_custom_call.1']
    %12 = vsyncpa [#allocation3], 0
    // Predicated region
    $region2: #{tpu_custom_call.1} parent=1 // pred_check
      _
    $region3: #{tpu_custom_call.1} parent=1 // pred_check_branch
      %14 = sbr.rel (0) target = $region5
    $region4: #{tpu_custom_call.1} parent=1 // pred_region
      _
    $region5: #{tpu_custom_call.1} parent=1 // pred_fallthru
      _
    // Predicated region
    $region6: #{tpu_custom_call.1} parent=1 // pred_check
      _
    $region7: #{tpu_custom_call.1} parent=1 // pred_check_branch
      %16 = sbr.rel (0) target = $region9
    $region8: #{tpu_custom_call.1} parent=1 // pred_region
      _
    $region9: #{tpu_custom_call.1} parent=1 // pred_fallthru
      _
    // Predicated region
    $region10: #{tpu_custom_call.1} parent=1 // pred_check
      _
    $region11: #{tpu_custom_call.1} parent=1 // pred_check_branch
      %18 = sbr.rel (0) target = $region13
    $region12: #{tpu_custom_call.1} parent=1 // pred_region
      _
    $region13: #{tpu_custom_call.1} parent=1 // pred_fallthru
      _
    // Predicated region
    $region14: #{tpu_custom_call.1} parent=1 // pred_check
      _
    $region15: #{tpu_custom_call.1} parent=1 // pred_check_branch
      %20 = sbr.rel (0) target = $region17
    $region16: #{tpu_custom_call.1} parent=1 // pred_region
      _
    $region17: #{tpu_custom_call.1} parent=1 // pred_fallthru
      _
    // Predicated region
    $region18: #{tpu_custom_call.1} parent=1 // pred_check
      _
    $region19: #{tpu_custom_call.1} parent=1 // pred_check_branch
      %22 = sbr.rel (0) target = $region21
    $region20: #{tpu_custom_call.1} parent=1 // pred_region
      _
    $region21: #{tpu_custom_call.1} parent=1 // pred_fallthru
      _
    // Predicated region
    $region22: #{tpu_custom_call.1} parent=1 // pred_check
      _
    $region23: #{tpu_custom_call.1} parent=1 // pred_check_branch
      %24 = sbr.rel (0) target = $region25
    $region24: #{tpu_custom_call.1} parent=1 // pred_region
      _
    $region25: #{tpu_custom_call.1} parent=1 // pred_fallthru
      _
    // Predicated region
    $region26: #{tpu_custom_call.1} parent=1 // pred_check
      _
    $region27: #{tpu_custom_call.1} parent=1 // pred_check_branch
      %26 = sbr.rel (0) target = $region29
    $region28: #{tpu_custom_call.1} parent=1 // pred_region
      _
    $region29: #{tpu_custom_call.1} parent=1 // pred_fallthru
      _
    %v28 = vld [vmem:[%s0] sm:$0xf]
    %v29 = vld [vmem:[%s0 + $0x4] sm:$0xf]
    %v30 = vld [vmem:[%s0 + $0x8] sm:$0xf]
    %v31 = vld [vmem:[%s0 + $0xc] sm:$0xf]
    %v32 = vld [vmem:[%s0 + $0x10] sm:$0xf]
    %v33 = vld [vmem:[%s0 + $0x14] sm:$0xf]
    %v34 = vld [vmem:[%s0 + $0x18] sm:$0xf]
    %v35 = vld [vmem:[%s0 + $0x1c] sm:$0xf]
    %v36 = vld [vmem:[%s0 + $0x20] sm:$0xf]
    %v37 = vld [vmem:[%s0 + $0x24] sm:$0xf]
    %v38 = vld [vmem:[%s0 + $0x28] sm:$0xf]
    %v39 = vld [vmem:[%s0 + $0x2c] sm:$0xf]
    %v40 = vld [vmem:[%s0 + $0x30] sm:$0xf]
    %v41 = vld [vmem:[%s0 + $0x34] sm:$0xf]
    %v42 = vld [vmem:[%s0 + $0x38] sm:$0xf]
    %v43 = vld [vmem:[%s0 + $0x3c] sm:$0xf]
    %v44 = vld [vmem:[%s0 + $0x40] sm:$0xf]
    %v45 = vld [vmem:[%s0 + $0x44] sm:$0xf]
    %v46 = vld [vmem:[%s0 + $0x48] sm:$0xf]
    %v47 = vld [vmem:[%s0 + $0x4c] sm:$0xf]
    %v48 = vld [vmem:[%s0 + $0x50] sm:$0xf]
    %v49 = vld [vmem:[%s0 + $0x54] sm:$0xf]
    %v50 = vld [vmem:[%s0 + $0x58] sm:$0xf]
    %v51 = vld [vmem:[%s0 + $0x5c] sm:$0xf]
    %v52 = vld [vmem:[%s0 + $0x60] sm:$0xf]
    %v53 = vld [vmem:[%s0 + $0x64] sm:$0xf]
    %v54 = vld [vmem:[%s0 + $0x68] sm:$0xf]
    %v55 = vld [vmem:[%s0 + $0x6c] sm:$0xf]
    %v56 = vld [vmem:[%s0 + $0x70] sm:$0xf]
    %v57 = vld [vmem:[%s0 + $0x74] sm:$0xf]
    %v58 = vld [vmem:[%s0 + $0x78] sm:$0xf]
    %v59 = vld [vmem:[%s0 + $0x7c] sm:$0xf]
    %v60 = vld [vmem:[%s0 + $0x80] sm:$0xf]
    %v61 = vld [vmem:[%s0 + $0x84] sm:$0xf]
    %v62 = vld [vmem:[%s0 + $0x88] sm:$0xf]
    %v63 = vld [vmem:[%s0 + $0x8c] sm:$0xf]
    %v64 = vld [vmem:[%s0 + $0x90] sm:$0xf]
    %v65 = vld [vmem:[%s0 + $0x94] sm:$0xf]
    %v66 = vld [vmem:[%s0 + $0x98] sm:$0xf]
    %v67 = vld [vmem:[%s0 + $0x9c] sm:$0xf]
    %v68 = vld [vmem:[%s0 + $0xa0] sm:$0xf]
    %v69 = vld [vmem:[%s0 + $0xa4] sm:$0xf]
    %v70 = vld [vmem:[%s0 + $0xa8] sm:$0xf]
    %v71 = vld [vmem:[%s0 + $0xac] sm:$0xf]
    %v72 = vld [vmem:[%s0 + $0xb0] sm:$0xf]
    %v73 = vld [vmem:[%s0 + $0xb4] sm:$0xf]
    %v74 = vld [vmem:[%s0 + $0xb8] sm:$0xf]
    %v75 = vld [vmem:[%s0 + $0xbc] sm:$0xf]
    %v76 = vld [vmem:[%s0 + $0xc0] sm:$0xf]
    %v77 = vld [vmem:[%s0 + $0xc4] sm:$0xf]
    %v78 = vld [vmem:[%s0 + $0xc8] sm:$0xf]
    %v79 = vld [vmem:[%s0 + $0xcc] sm:$0xf]
    %v80 = vld [vmem:[%s0 + $0xd0] sm:$0xf]
    %v81 = vld [vmem:[%s0 + $0xd4] sm:$0xf]
    %v82 = vld [vmem:[%s0 + $0xd8] sm:$0xf]
    %v83 = vld [vmem:[%s0 + $0xdc] sm:$0xf]
    %v84 = vld [vmem:[%s0 + $0xe0] sm:$0xf]
    %v85 = vld [vmem:[%s0 + $0xe4] sm:$0xf]
    %v86 = vld [vmem:[%s0 + $0xe8] sm:$0xf]
    %v87 = vld [vmem:[%s0 + $0xec] sm:$0xf]
    %v88 = vld [vmem:[%s0 + $0xf0] sm:$0xf]
    %v89 = vld [vmem:[%s0 + $0xf4] sm:$0xf]
    %v90 = vld [vmem:[%s0 + $0xf8] sm:$0xf]
    %v91 = vld [vmem:[%s0 + $0xfc] sm:$0xf]
    %v92 = vld [vmem:[%s1] sm:$0xf]
    %v93 = vld [vmem:[%s1 + $0x4] sm:$0xf]
    %v94 = vld [vmem:[%s1 + $0x8] sm:$0xf]
    %v95 = vld [vmem:[%s1 + $0xc] sm:$0xf]
    %v96 = vld [vmem:[%s1 + $0x10] sm:$0xf]
    %v97 = vld [vmem:[%s1 + $0x14] sm:$0xf]
    %v98 = vld [vmem:[%s1 + $0x18] sm:$0xf]
    %v99 = vld [vmem:[%s1 + $0x1c] sm:$0xf]
    %v100 = vld [vmem:[%s2] sm:$0x1]
    %v102 = vlaneseq
    %v103 = vshrl.u32 %v102, 7
    %v104 = vsub.s32 0, %v103
    %v105 = vrot.slane %v100, %v104
    %v171 = vunpack.c.l.b16 %v28
    %v172 = vunpack.c.l.b16 %v29
    %v173 = vunpack.c.l.b16 %v30
    %v174 = vunpack.c.l.b16 %v31
    %v175 = vunpack.c.l.b16 %v32
    %v176 = vunpack.c.l.b16 %v33
    %v177 = vunpack.c.l.b16 %v34
    %v178 = vunpack.c.l.b16 %v35
    %v179 = vunpack.c.l.b16 %v36
    %v180 = vunpack.c.l.b16 %v37
    %v181 = vunpack.c.l.b16 %v38
    %v182 = vunpack.c.l.b16 %v39
    %v183 = vunpack.c.l.b16 %v40
    %v184 = vunpack.c.l.b16 %v41
    %v185 = vunpack.c.l.b16 %v42
    %v186 = vunpack.c.l.b16 %v43
    %v187 = vunpack.c.l.b16 %v44
    %v188 = vunpack.c.l.b16 %v45
    %v189 = vunpack.c.l.b16 %v46
    %v190 = vunpack.c.l.b16 %v47
    %v191 = vunpack.c.l.b16 %v48
    %v192 = vunpack.c.l.b16 %v49
    %v193 = vunpack.c.l.b16 %v50
    %v194 = vunpack.c.l.b16 %v51
    %v195 = vunpack.c.l.b16 %v52
    %v196 = vunpack.c.l.b16 %v53
    %v197 = vunpack.c.l.b16 %v54
    %v198 = vunpack.c.l.b16 %v55
    %v199 = vunpack.c.l.b16 %v56
    %v200 = vunpack.c.l.b16 %v57
    %v201 = vunpack.c.l.b16 %v58
    %v202 = vunpack.c.l.b16 %v59
    %v203 = vunpack.c.l.b16 %v60
    %v204 = vunpack.c.l.b16 %v61
    %v205 = vunpack.c.l.b16 %v62
    %v206 = vunpack.c.l.b16 %v63
    %v207 = vunpack.c.l.b16 %v64
    %v208 = vunpack.c.l.b16 %v65
    %v209 = vunpack.c.l.b16 %v66
    %v210 = vunpack.c.l.b16 %v67
    %v211 = vunpack.c.l.b16 %v68
    %v212 = vunpack.c.l.b16 %v69
    %v213 = vunpack.c.l.b16 %v70
    %v214 = vunpack.c.l.b16 %v71
    %v215 = vunpack.c.l.b16 %v72
    %v216 = vunpack.c.l.b16 %v73
    %v217 = vunpack.c.l.b16 %v74
    %v218 = vunpack.c.l.b16 %v75
    %v219 = vunpack.c.l.b16 %v76
    %v220 = vunpack.c.l.b16 %v77
    %v221 = vunpack.c.l.b16 %v78
    %v222 = vunpack.c.l.b16 %v79
    %v223 = vunpack.c.l.b16 %v80
    %v224 = vunpack.c.l.b16 %v81
    %v225 = vunpack.c.l.b16 %v82
    %v226 = vunpack.c.l.b16 %v83
    %v227 = vunpack.c.l.b16 %v84
    %v228 = vunpack.c.l.b16 %v85
    %v229 = vunpack.c.l.b16 %v86
    %v230 = vunpack.c.l.b16 %v87
    %v231 = vunpack.c.l.b16 %v88
    %v232 = vunpack.c.l.b16 %v89
    %v233 = vunpack.c.l.b16 %v90
    %v234 = vunpack.c.l.b16 %v91
    %v235 = vpack.c.b16 %v172, %v171
    %v236 = vpack.c.b16 %v174, %v173
    %v237 = vpack.c.b16 %v176, %v175
    %v238 = vpack.c.b16 %v178, %v177
    %v239 = vpack.c.b16 %v180, %v179
    %v240 = vpack.c.b16 %v182, %v181
    %v241 = vpack.c.b16 %v184, %v183
    %v242 = vpack.c.b16 %v186, %v185
    %v243 = vpack.c.b16 %v188, %v187
    %v244 = vpack.c.b16 %v190, %v189
    %v245 = vpack.c.b16 %v192, %v191
    %v246 = vpack.c.b16 %v194, %v193
    %v247 = vpack.c.b16 %v196, %v195
    %v248 = vpack.c.b16 %v198, %v197
    %v249 = vpack.c.b16 %v200, %v199
    %v250 = vpack.c.b16 %v202, %v201
    %v251 = vpack.c.b16 %v204, %v203
    %v252 = vpack.c.b16 %v206, %v205
    %v253 = vpack.c.b16 %v208, %v207
    %v254 = vpack.c.b16 %v210, %v209
    %v255 = vpack.c.b16 %v212, %v211
    %v256 = vpack.c.b16 %v214, %v213
    %v257 = vpack.c.b16 %v216, %v215
    %v258 = vpack.c.b16 %v218, %v217
    %v259 = vpack.c.b16 %v220, %v219
    %v260 = vpack.c.b16 %v222, %v221
    %v261 = vpack.c.b16 %v224, %v223
    %v262 = vpack.c.b16 %v226, %v225
    %v263 = vpack.c.b16 %v228, %v227
    %v264 = vpack.c.b16 %v230, %v229
    %v265 = vpack.c.b16 %v232, %v231
    %v266 = vpack.c.b16 %v234, %v233
    %v275 = vunpack.c.l.b16 %v92
    %v276 = vunpack.c.l.b16 %v93
    %v277 = vunpack.c.l.b16 %v94
    %v278 = vunpack.c.l.b16 %v95
    %v279 = vunpack.c.l.b16 %v96
    %v280 = vunpack.c.l.b16 %v97
    %v281 = vunpack.c.l.b16 %v98
    %v282 = vunpack.c.l.b16 %v99
    %v283 = vpack.c.b16 %v276, %v275
    %v284 = vpack.c.b16 %v278, %v277
    %v285 = vpack.c.b16 %v280, %v279
    %v286 = vpack.c.b16 %v282, %v281
    %vm291 = vcmask 523264
    %v293 = vsel %vm291, %v235, 0
    %v296 = vsel %vm291, %v236, 0
    %v299 = vsel %vm291, %v237, 0
    %v302 = vsel %vm291, %v238, 0
    %v305 = vsel %vm291, %v239, 0
    %v308 = vsel %vm291, %v240, 0
    %v311 = vsel %vm291, %v241, 0
    %v314 = vsel %vm291, %v242, 0
    %v317 = vsel %vm291, %v243, 0
    %v320 = vsel %vm291, %v244, 0
    %v323 = vsel %vm291, %v245, 0
    %v326 = vsel %vm291, %v246, 0
    %v329 = vsel %vm291, %v247, 0
    %v332 = vsel %vm291, %v248, 0
    %v335 = vsel %vm291, %v249, 0
    %v338 = vsel %vm291, %v250, 0
    %v341 = vsel %vm291, %v251, 0
    %v344 = vsel %vm291, %v252, 0
    %v347 = vsel %vm291, %v253, 0
    %v350 = vsel %vm291, %v254, 0
    %v353 = vsel %vm291, %v255, 0
    %v356 = vsel %vm291, %v256, 0
    %v359 = vsel %vm291, %v257, 0
    %v362 = vsel %vm291, %v258, 0
    %v365 = vsel %vm291, %v259, 0
    %v368 = vsel %vm291, %v260, 0
    %v371 = vsel %vm291, %v261, 0
    %v374 = vsel %vm291, %v262, 0
    %v377 = vsel %vm291, %v263, 0
    %v380 = vsel %vm291, %v264, 0
    %v383 = vsel %vm291, %v265, 0
    %v386 = vsel %vm291, %v266, 0
    %388 = vmatprep.subr.bf16.mxu0 0
    %389 = vmatpush1.bf16.msra.mxu0 0
    %390 = vmatprep.subr.bf16.mxu0 0
    %391 = vmatpush1.bf16.msra.mxu0 0
    %392 = vmatprep.subr.bf16.mxu0 0
    %393 = vmatpush1.bf16.msra.mxu0 0
    %394 = vmatprep.subr.bf16.mxu0 0
    %395 = vmatpush1.bf16.msra.mxu0 0
    %396 = vmatprep.subr.bf16.mxu0 0
    %397 = vmatpush1.bf16.msra.mxu0 %v286
    %398 = vmatprep.subr.bf16.mxu0 0
    %399 = vmatpush1.bf16.msra.mxu0 %v285
    %400 = vmatprep.subr.bf16.mxu0 0
    %401 = vmatpush1.bf16.msra.mxu0 %v284
    %402 = vmatprep.subr.bf16.mxu0 0
    %403 = vmatpush1.bf16.msra.mxu0 %v283
    %404 = vmatprep.subr.bf16.mxu0 0
    %405 = vmatpush2.bf16.msra.mxu0 0
    %406 = vmatprep.subr.bf16.mxu0 0
    %407 = vmatpush2.bf16.msra.mxu0 0
    %408 = vmatprep.subr.bf16.mxu0 0
    %409 = vmatpush2.bf16.msra.mxu0 0
    %410 = vmatprep.subr.bf16.mxu0 0
    %411 = vmatpush2.bf16.msra.mxu0 0
    %412 = vmatprep.subr.bf16.mxu0 0
    %413 = vmatpush2.bf16.msra.mxu0 0
    %414 = vmatprep.subr.bf16.mxu0 0
    %415 = vmatpush2.bf16.msra.mxu0 0
    %416 = vmatprep.subr.bf16.mxu0 0
    %417 = vmatpush2.bf16.msra.mxu0 0
    %418 = vmatprep.subr.bf16.mxu0 0
    %419 = vmatpush2.bf16.msra.mxu0 0
    %420 = vmatprep.mubr.bf16.mxu0 0
    %421 = vmatmul.mubr.bf16.gmra.mxu0 %v293
    %v422 = vpop.f32.mrf.mxu0
    %v423 = vadd.f32 %v105, %v422
    %v424 = vpop.f32.mrf.mxu0
    %v425 = vpop.f32.mrf.mxu0
    %v426 = vadd.f32 %v105, %v425
    %v427 = vpop.f32.mrf.mxu0
    %428 = vmatprep.mubr.bf16.mxu0 0
    %429 = vmatmul.mubr.bf16.gmra.mxu0 %v296
    %v430 = vpop.f32.mrf.mxu0
    %v431 = vadd.f32 %v105, %v430
    %v432 = vpop.f32.mrf.mxu0
    %v433 = vpop.f32.mrf.mxu0
    %v434 = vadd.f32 %v105, %v433
    %v435 = vpop.f32.mrf.mxu0
    %436 = vmatprep.mubr.bf16.mxu0 0
    %437 = vmatmul.mubr.bf16.gmra.mxu0 %v299
    %v438 = vpop.f32.mrf.mxu0
    %v439 = vadd.f32 %v105, %v438
    %v440 = vpop.f32.mrf.mxu0
    %v441 = vpop.f32.mrf.mxu0
    %v442 = vadd.f32 %v105, %v441
    %v443 = vpop.f32.mrf.mxu0
    %444 = vmatprep.mubr.bf16.mxu0 0
    %445 = vmatmul.mubr.bf16.gmra.mxu0 %v302
    %v446 = vpop.f32.mrf.mxu0
    %v447 = vadd.f32 %v105, %v446
    %v448 = vpop.f32.mrf.mxu0
    %v449 = vpop.f32.mrf.mxu0
    %v450 = vadd.f32 %v105, %v449
    %v451 = vpop.f32.mrf.mxu0
    %452 = vmatprep.mubr.bf16.mxu0 0
    %453 = vmatmul.mubr.bf16.gmra.mxu0 %v305
    %v454 = vpop.f32.mrf.mxu0
    %v455 = vadd.f32 %v105, %v454
    %v456 = vpop.f32.mrf.mxu0
    %v457 = vpop.f32.mrf.mxu0
    %v458 = vadd.f32 %v105, %v457
    %v459 = vpop.f32.mrf.mxu0
    %460 = vmatprep.mubr.bf16.mxu0 0
    %461 = vmatmul.mubr.bf16.gmra.mxu0 %v308
    %v462 = vpop.f32.mrf.mxu0
    %v463 = vadd.f32 %v105, %v462
    %v464 = vpop.f32.mrf.mxu0
    %v465 = vpop.f32.mrf.mxu0
    %v466 = vadd.f32 %v105, %v465
    %v467 = vpop.f32.mrf.mxu0
    %468 = vmatprep.mubr.bf16.mxu0 0
    %469 = vmatmul.mubr.bf16.gmra.mxu0 %v311
    %v470 = vpop.f32.mrf.mxu0
    %v471 = vadd.f32 %v105, %v470
    %v472 = vpop.f32.mrf.mxu0
    %v473 = vpop.f32.mrf.mxu0
    %v474 = vadd.f32 %v105, %v473
    %v475 = vpop.f32.mrf.mxu0
    %476 = vmatprep.mubr.bf16.mxu0 0
    %477 = vmatmul.mubr.bf16.gmra.mxu0 %v314
    %v478 = vpop.f32.mrf.mxu0
    %v479 = vadd.f32 %v105, %v478
    %v480 = vpop.f32.mrf.mxu0
    %v481 = vpop.f32.mrf.mxu0
    %v482 = vadd.f32 %v105, %v481
    %v483 = vpop.f32.mrf.mxu0
    %484 = vmatprep.mubr.bf16.mxu0 0
    %485 = vmatmul.mubr.bf16.gmra.mxu0 %v317
    %v486 = vpop.f32.mrf.mxu0
    %v487 = vadd.f32 %v105, %v486
    %v488 = vpop.f32.mrf.mxu0
    %v489 = vpop.f32.mrf.mxu0
    %v490 = vadd.f32 %v105, %v489
    %v491 = vpop.f32.mrf.mxu0
    %492 = vmatprep.mubr.bf16.mxu0 0
    %493 = vmatmul.mubr.bf16.gmra.mxu0 %v320
    %v494 = vpop.f32.mrf.mxu0
    %v495 = vadd.f32 %v105, %v494
    %v496 = vpop.f32.mrf.mxu0
    %v497 = vpop.f32.mrf.mxu0
    %v498 = vadd.f32 %v105, %v497
    %v499 = vpop.f32.mrf.mxu0
    %500 = vmatprep.mubr.bf16.mxu0 0
    %501 = vmatmul.mubr.bf16.gmra.mxu0 %v323
    %v502 = vpop.f32.mrf.mxu0
    %v503 = vadd.f32 %v105, %v502
    %v504 = vpop.f32.mrf.mxu0
    %v505 = vpop.f32.mrf.mxu0
    %v506 = vadd.f32 %v105, %v505
    %v507 = vpop.f32.mrf.mxu0
    %508 = vmatprep.mubr.bf16.mxu0 0
    %509 = vmatmul.mubr.bf16.gmra.mxu0 %v326
    %v510 = vpop.f32.mrf.mxu0
    %v511 = vadd.f32 %v105, %v510
    %v512 = vpop.f32.mrf.mxu0
    %v513 = vpop.f32.mrf.mxu0
    %v514 = vadd.f32 %v105, %v513
    %v515 = vpop.f32.mrf.mxu0
    %516 = vmatprep.mubr.bf16.mxu0 0
    %517 = vmatmul.mubr.bf16.gmra.mxu0 %v329
    %v518 = vpop.f32.mrf.mxu0
    %v519 = vadd.f32 %v105, %v518
    %v520 = vpop.f32.mrf.mxu0
    %v521 = vpop.f32.mrf.mxu0
    %v522 = vadd.f32 %v105, %v521
    %v523 = vpop.f32.mrf.mxu0
    %524 = vmatprep.mubr.bf16.mxu0 0
    %525 = vmatmul.mubr.bf16.gmra.mxu0 %v332
    %v526 = vpop.f32.mrf.mxu0
    %v527 = vadd.f32 %v105, %v526
    %v528 = vpop.f32.mrf.mxu0
    %v529 = vpop.f32.mrf.mxu0
    %v530 = vadd.f32 %v105, %v529
    %v531 = vpop.f32.mrf.mxu0
    %532 = vmatprep.mubr.bf16.mxu0 0
    %533 = vmatmul.mubr.bf16.gmra.mxu0 %v335
    %v534 = vpop.f32.mrf.mxu0
    %v535 = vadd.f32 %v105, %v534
    %v536 = vpop.f32.mrf.mxu0
    %v537 = vpop.f32.mrf.mxu0
    %v538 = vadd.f32 %v105, %v537
    %v539 = vpop.f32.mrf.mxu0
    %540 = vmatprep.mubr.bf16.mxu0 0
    %541 = vmatmul.mubr.bf16.gmra.mxu0 %v338
    %v542 = vpop.f32.mrf.mxu0
    %v543 = vadd.f32 %v105, %v542
    %v544 = vpop.f32.mrf.mxu0
    %v545 = vpop.f32.mrf.mxu0
    %v546 = vadd.f32 %v105, %v545
    %v547 = vpop.f32.mrf.mxu0
    %548 = vmatprep.mubr.bf16.mxu0 0
    %549 = vmatmul.mubr.bf16.gmra.mxu0 %v341
    %v550 = vpop.f32.mrf.mxu0
    %v551 = vadd.f32 %v105, %v550
    %v552 = vpop.f32.mrf.mxu0
    %v553 = vpop.f32.mrf.mxu0
    %v554 = vadd.f32 %v105, %v553
    %v555 = vpop.f32.mrf.mxu0
    %556 = vmatprep.mubr.bf16.mxu0 0
    %557 = vmatmul.mubr.bf16.gmra.mxu0 %v344
    %v558 = vpop.f32.mrf.mxu0
    %v559 = vadd.f32 %v105, %v558
    %v560 = vpop.f32.mrf.mxu0
    %v561 = vpop.f32.mrf.mxu0
    %v562 = vadd.f32 %v105, %v561
    %v563 = vpop.f32.mrf.mxu0
    %564 = vmatprep.mubr.bf16.mxu0 0
    %565 = vmatmul.mubr.bf16.gmra.mxu0 %v347
    %v566 = vpop.f32.mrf.mxu0
    %v567 = vadd.f32 %v105, %v566
    %v568 = vpop.f32.mrf.mxu0
    %v569 = vpop.f32.mrf.mxu0
    %v570 = vadd.f32 %v105, %v569
    %v571 = vpop.f32.mrf.mxu0
    %572 = vmatprep.mubr.bf16.mxu0 0
    %573 = vmatmul.mubr.bf16.gmra.mxu0 %v350
    %v574 = vpop.f32.mrf.mxu0
    %v575 = vadd.f32 %v105, %v574
    %v576 = vpop.f32.mrf.mxu0
    %v577 = vpop.f32.mrf.mxu0
    %v578 = vadd.f32 %v105, %v577
    %v579 = vpop.f32.mrf.mxu0
    %580 = vmatprep.mubr.bf16.mxu0 0
    %581 = vmatmul.mubr.bf16.gmra.mxu0 %v353
    %v582 = vpop.f32.mrf.mxu0
    %v583 = vadd.f32 %v105, %v582
    %v584 = vpop.f32.mrf.mxu0
    %v585 = vpop.f32.mrf.mxu0
    %v586 = vadd.f32 %v105, %v585
    %v587 = vpop.f32.mrf.mxu0
    %588 = vmatprep.mubr.bf16.mxu0 0
    %589 = vmatmul.mubr.bf16.gmra.mxu0 %v356
    %v590 = vpop.f32.mrf.mxu0
    %v591 = vadd.f32 %v105, %v590
    %v592 = vpop.f32.mrf.mxu0
    %v593 = vpop.f32.mrf.mxu0
    %v594 = vadd.f32 %v105, %v593
    %v595 = vpop.f32.mrf.mxu0
    %596 = vmatprep.mubr.bf16.mxu0 0
    %597 = vmatmul.mubr.bf16.gmra.mxu0 %v359
    %v598 = vpop.f32.mrf.mxu0
    %v599 = vadd.f32 %v105, %v598
    %v600 = vpop.f32.mrf.mxu0
    %v601 = vpop.f32.mrf.mxu0
    %v602 = vadd.f32 %v105, %v601
    %v603 = vpop.f32.mrf.mxu0
    %604 = vmatprep.mubr.bf16.mxu0 0
    %605 = vmatmul.mubr.bf16.gmra.mxu0 %v362
    %v606 = vpop.f32.mrf.mxu0
    %v607 = vadd.f32 %v105, %v606
    %v608 = vpop.f32.mrf.mxu0
    %v609 = vpop.f32.mrf.mxu0
    %v610 = vadd.f32 %v105, %v609
    %v611 = vpop.f32.mrf.mxu0
    %612 = vmatprep.mubr.bf16.mxu0 0
    %613 = vmatmul.mubr.bf16.gmra.mxu0 %v365
    %v614 = vpop.f32.mrf.mxu0
    %v615 = vadd.f32 %v105, %v614
    %v616 = vpop.f32.mrf.mxu0
    %v617 = vpop.f32.mrf.mxu0
    %v618 = vadd.f32 %v105, %v617
    %v619 = vpop.f32.mrf.mxu0
    %620 = vmatprep.mubr.bf16.mxu0 0
    %621 = vmatmul.mubr.bf16.gmra.mxu0 %v368
    %v622 = vpop.f32.mrf.mxu0
    %v623 = vadd.f32 %v105, %v622
    %v624 = vpop.f32.mrf.mxu0
    %v625 = vpop.f32.mrf.mxu0
    %v626 = vadd.f32 %v105, %v625
    %v627 = vpop.f32.mrf.mxu0
    %628 = vmatprep.mubr.bf16.mxu0 0
    %629 = vmatmul.mubr.bf16.gmra.mxu0 %v371
    %v630 = vpop.f32.mrf.mxu0
    %v631 = vadd.f32 %v105, %v630
    %v632 = vpop.f32.mrf.mxu0
    %v633 = vpop.f32.mrf.mxu0
    %v634 = vadd.f32 %v105, %v633
    %v635 = vpop.f32.mrf.mxu0
    %636 = vmatprep.mubr.bf16.mxu0 0
    %637 = vmatmul.mubr.bf16.gmra.mxu0 %v374
    %v638 = vpop.f32.mrf.mxu0
    %v639 = vadd.f32 %v105, %v638
    %v640 = vpop.f32.mrf.mxu0
    %v641 = vpop.f32.mrf.mxu0
    %v642 = vadd.f32 %v105, %v641
    %v643 = vpop.f32.mrf.mxu0
    %644 = vmatprep.mubr.bf16.mxu0 0
    %645 = vmatmul.mubr.bf16.gmra.mxu0 %v377
    %v646 = vpop.f32.mrf.mxu0
    %v647 = vadd.f32 %v105, %v646
    %v648 = vpop.f32.mrf.mxu0
    %v649 = vpop.f32.mrf.mxu0
    %v650 = vadd.f32 %v105, %v649
    %v651 = vpop.f32.mrf.mxu0
    %652 = vmatprep.mubr.bf16.mxu0 0
    %653 = vmatmul.mubr.bf16.gmra.mxu0 %v380
    %v654 = vpop.f32.mrf.mxu0
    %v655 = vadd.f32 %v105, %v654
    %v656 = vpop.f32.mrf.mxu0
    %v657 = vpop.f32.mrf.mxu0
    %v658 = vadd.f32 %v105, %v657
    %v659 = vpop.f32.mrf.mxu0
    %660 = vmatprep.mubr.bf16.mxu0 0
    %661 = vmatmul.mubr.bf16.gmra.mxu0 %v383
    %v662 = vpop.f32.mrf.mxu0
    %v663 = vadd.f32 %v105, %v662
    %v664 = vpop.f32.mrf.mxu0
    %v665 = vpop.f32.mrf.mxu0
    %v666 = vadd.f32 %v105, %v665
    %v667 = vpop.f32.mrf.mxu0
    %668 = vmatprep.mubr.bf16.mxu0 0
    %669 = vmatmul.mubr.bf16.gmra.mxu0 %v386
    %v670 = vpop.f32.mrf.mxu0
    %v671 = vadd.f32 %v105, %v670
    %v672 = vpop.f32.mrf.mxu0
    %v673 = vpop.f32.mrf.mxu0
    %v674 = vadd.f32 %v105, %v673
    %v675 = vpop.f32.mrf.mxu0
    %676 = vdwg.mxu0
    %v677 = vmax.f32 %v423, 0.0
    %v678 = vmax.f32 %v426, 0.0
    %v679 = vmax.f32 %v431, 0.0
    %v680 = vmax.f32 %v434, 0.0
    %v681 = vmax.f32 %v439, 0.0
    %v682 = vmax.f32 %v442, 0.0
    %v683 = vmax.f32 %v447, 0.0
    %v684 = vmax.f32 %v450, 0.0
    %v685 = vmax.f32 %v455, 0.0
    %v686 = vmax.f32 %v458, 0.0
    %v687 = vmax.f32 %v463, 0.0
    %v688 = vmax.f32 %v466, 0.0
    %v689 = vmax.f32 %v471, 0.0
    %v690 = vmax.f32 %v474, 0.0
    %v691 = vmax.f32 %v479, 0.0
    %v692 = vmax.f32 %v482, 0.0
    %v693 = vmax.f32 %v487, 0.0
    %v694 = vmax.f32 %v490, 0.0
    %v695 = vmax.f32 %v495, 0.0
    %v696 = vmax.f32 %v498, 0.0
    %v697 = vmax.f32 %v503, 0.0
    %v698 = vmax.f32 %v506, 0.0
    %v699 = vmax.f32 %v511, 0.0
    %v700 = vmax.f32 %v514, 0.0
    %v701 = vmax.f32 %v519, 0.0
    %v702 = vmax.f32 %v522, 0.0
    %v703 = vmax.f32 %v527, 0.0
    %v704 = vmax.f32 %v530, 0.0
    %v705 = vmax.f32 %v535, 0.0
    %v706 = vmax.f32 %v538, 0.0
    %v707 = vmax.f32 %v543, 0.0
    %v708 = vmax.f32 %v546, 0.0
    %v709 = vmax.f32 %v551, 0.0
    %v710 = vmax.f32 %v554, 0.0
    %v711 = vmax.f32 %v559, 0.0
    %v712 = vmax.f32 %v562, 0.0
    %v713 = vmax.f32 %v567, 0.0
    %v714 = vmax.f32 %v570, 0.0
    %v715 = vmax.f32 %v575, 0.0
    %v716 = vmax.f32 %v578, 0.0
    %v717 = vmax.f32 %v583, 0.0
    %v718 = vmax.f32 %v586, 0.0
    %v719 = vmax.f32 %v591, 0.0
    %v720 = vmax.f32 %v594, 0.0
    %v721 = vmax.f32 %v599, 0.0
    %v722 = vmax.f32 %v602, 0.0
    %v723 = vmax.f32 %v607, 0.0
    %v724 = vmax.f32 %v610, 0.0
    %v725 = vmax.f32 %v615, 0.0
    %v726 = vmax.f32 %v618, 0.0
    %v727 = vmax.f32 %v623, 0.0
    %v728 = vmax.f32 %v626, 0.0
    %v729 = vmax.f32 %v631, 0.0
    %v730 = vmax.f32 %v634, 0.0
    %v731 = vmax.f32 %v639, 0.0
    %v732 = vmax.f32 %v642, 0.0
    %v733 = vmax.f32 %v647, 0.0
    %v734 = vmax.f32 %v650, 0.0
    %v735 = vmax.f32 %v655, 0.0
    %v736 = vmax.f32 %v658, 0.0
    %v737 = vmax.f32 %v663, 0.0
    %v738 = vmax.f32 %v666, 0.0
    %v739 = vmax.f32 %v671, 0.0
    %v740 = vmax.f32 %v674, 0.0
    %v741 = vpack.c.bf16 %v678, %v677
    %v742 = vpack.c.bf16 %v680, %v679
    %v743 = vpack.c.bf16 %v682, %v681
    %v744 = vpack.c.bf16 %v684, %v683
    %v745 = vpack.c.bf16 %v686, %v685
    %v746 = vpack.c.bf16 %v688, %v687
    %v747 = vpack.c.bf16 %v690, %v689
    %v748 = vpack.c.bf16 %v692, %v691
    %v749 = vpack.c.bf16 %v694, %v693
    %v750 = vpack.c.bf16 %v696, %v695
    %v751 = vpack.c.bf16 %v698, %v697
    %v752 = vpack.c.bf16 %v700, %v699
    %v753 = vpack.c.bf16 %v702, %v701
    %v754 = vpack.c.bf16 %v704, %v703
    %v755 = vpack.c.bf16 %v706, %v705
    %v756 = vpack.c.bf16 %v708, %v707
    %v757 = vpack.c.bf16 %v710, %v709
    %v758 = vpack.c.bf16 %v712, %v711
    %v759 = vpack.c.bf16 %v714, %v713
    %v760 = vpack.c.bf16 %v716, %v715
    %v761 = vpack.c.bf16 %v718, %v717
    %v762 = vpack.c.bf16 %v720, %v719
    %v763 = vpack.c.bf16 %v722, %v721
    %v764 = vpack.c.bf16 %v724, %v723
    %v765 = vpack.c.bf16 %v726, %v725
    %v766 = vpack.c.bf16 %v728, %v727
    %v767 = vpack.c.bf16 %v730, %v729
    %v768 = vpack.c.bf16 %v732, %v731
    %v769 = vpack.c.bf16 %v734, %v733
    %v770 = vpack.c.bf16 %v736, %v735
    %v771 = vpack.c.bf16 %v738, %v737
    %v772 = vpack.c.bf16 %v740, %v739
    %v773 = vld [vmem:[%s3] sm:$0xf]
    %v774 = vld [vmem:[%s3 + $0x4] sm:$0xf]
    %v775 = vld [vmem:[%s3 + $0x8] sm:$0xf]
    %v776 = vld [vmem:[%s3 + $0xc] sm:$0xf]
    %v777 = vld [vmem:[%s4] sm:$0x1]
    %v779 = vlaneseq
    %v780 = vshrl.u32 %v779, 7
    %v781 = vsub.s32 0, %v780
    %v782 = vrot.slane %v777, %v781
    %v788 = vunpack.c.l.b16 %v773
    %v789 = vunpack.c.l.b16 %v774
    %v790 = vunpack.c.l.b16 %v775
    %v791 = vunpack.c.l.b16 %v776
    %v792 = vpack.c.b16 %v789, %v788
    %v793 = vpack.c.b16 %v791, %v790
    %vm796 = vcmask 261120
    %v798 = vsel %vm796, %v741, 0
    %v801 = vsel %vm796, %v742, 0
    %v804 = vsel %vm796, %v743, 0
    %v807 = vsel %vm796, %v744, 0
    %v810 = vsel %vm796, %v745, 0
    %v813 = vsel %vm796, %v746, 0
    %v816 = vsel %vm796, %v747, 0
    %v819 = vsel %vm796, %v748, 0
    %v822 = vsel %vm796, %v749, 0
    %v825 = vsel %vm796, %v750, 0
    %v828 = vsel %vm796, %v751, 0
    %v831 = vsel %vm796, %v752, 0
    %v834 = vsel %vm796, %v753, 0
    %v837 = vsel %vm796, %v754, 0
    %v840 = vsel %vm796, %v755, 0
    %v843 = vsel %vm796, %v756, 0
    %v846 = vsel %vm796, %v757, 0
    %v849 = vsel %vm796, %v758, 0
    %v852 = vsel %vm796, %v759, 0
    %v855 = vsel %vm796, %v760, 0
    %v858 = vsel %vm796, %v761, 0
    %v861 = vsel %vm796, %v762, 0
    %v864 = vsel %vm796, %v763, 0
    %v867 = vsel %vm796, %v764, 0
    %v870 = vsel %vm796, %v765, 0
    %v873 = vsel %vm796, %v766, 0
    %v876 = vsel %vm796, %v767, 0
    %v879 = vsel %vm796, %v768, 0
    %v882 = vsel %vm796, %v769, 0
    %v885 = vsel %vm796, %v770, 0
    %v888 = vsel %vm796, %v771, 0
    %v891 = vsel %vm796, %v772, 0
    %893 = vmatprep.subr.bf16.mxu0 0
    %894 = vmatpush1.bf16.msra.mxu0 0
    %895 = vmatprep.subr.bf16.mxu0 0
    %896 = vmatpush1.bf16.msra.mxu0 0
    %897 = vmatprep.subr.bf16.mxu0 0
    %898 = vmatpush1.bf16.msra.mxu0 0
    %899 = vmatprep.subr.bf16.mxu0 0
    %900 = vmatpush1.bf16.msra.mxu0 0
    %901 = vmatprep.subr.bf16.mxu0 0
    %902 = vmatpush1.bf16.msra.mxu0 0
    %903 = vmatprep.subr.bf16.mxu0 0
    %904 = vmatpush1.bf16.msra.mxu0 0
    %905 = vmatprep.subr.bf16.mxu0 0
    %906 = vmatpush1.bf16.msra.mxu0 %v793
    %907 = vmatprep.subr.bf16.mxu0 0
    %908 = vmatpush1.bf16.msra.mxu0 %v792
    %909 = vmatprep.subr.bf16.mxu0 0
    %910 = vmatpush2.bf16.msra.mxu0 0
    %911 = vmatprep.subr.bf16.mxu0 0
    %912 = vmatpush2.bf16.msra.mxu0 0
    %913 = vmatprep.subr.bf16.mxu0 0
    %914 = vmatpush2.bf16.msra.mxu0 0
    %915 = vmatprep.subr.bf16.mxu0 0
    %916 = vmatpush2.bf16.msra.mxu0 0
    %917 = vmatprep.subr.bf16.mxu0 0
    %918 = vmatpush2.bf16.msra.mxu0 0
    %919 = vmatprep.subr.bf16.mxu0 0
    %920 = vmatpush2.bf16.msra.mxu0 0
    %921 = vmatprep.subr.bf16.mxu0 0
    %922 = vmatpush2.bf16.msra.mxu0 0
    %923 = vmatprep.subr.bf16.mxu0 0
    %924 = vmatpush2.bf16.msra.mxu0 0
    %925 = vmatprep.mubr.bf16.mxu0 0
    %926 = vmatmul.mubr.bf16.gmra.mxu0 %v798
    %v927 = vpop.f32.mrf.mxu0
    %v928 = vadd.f32 %v782, %v927
    %v929 = vpop.f32.mrf.mxu0
    %v930 = vpop.f32.mrf.mxu0
    %v931 = vadd.f32 %v782, %v930
    %v932 = vpop.f32.mrf.mxu0
    %933 = vmatprep.mubr.bf16.mxu0 0
    %934 = vmatmul.mubr.bf16.gmra.mxu0 %v801
    %v935 = vpop.f32.mrf.mxu0
    %v936 = vadd.f32 %v782, %v935
    %v937 = vpop.f32.mrf.mxu0
    %v938 = vpop.f32.mrf.mxu0
    %v939 = vadd.f32 %v782, %v938
    %v940 = vpop.f32.mrf.mxu0
    %941 = vmatprep.mubr.bf16.mxu0 0
    %942 = vmatmul.mubr.bf16.gmra.mxu0 %v804
    %v943 = vpop.f32.mrf.mxu0
    %v944 = vadd.f32 %v782, %v943
    %v945 = vpop.f32.mrf.mxu0
    %v946 = vpop.f32.mrf.mxu0
    %v947 = vadd.f32 %v782, %v946
    %v948 = vpop.f32.mrf.mxu0
    %949 = vmatprep.mubr.bf16.mxu0 0
    %950 = vmatmul.mubr.bf16.gmra.mxu0 %v807
    %v951 = vpop.f32.mrf.mxu0
    %v952 = vadd.f32 %v782, %v951
    %v953 = vpop.f32.mrf.mxu0
    %v954 = vpop.f32.mrf.mxu0
    %v955 = vadd.f32 %v782, %v954
    %v956 = vpop.f32.mrf.mxu0
    %957 = vmatprep.mubr.bf16.mxu0 0
    %958 = vmatmul.mubr.bf16.gmra.mxu0 %v810
    %v959 = vpop.f32.mrf.mxu0
    %v960 = vadd.f32 %v782, %v959
    %v961 = vpop.f32.mrf.mxu0
    %v962 = vpop.f32.mrf.mxu0
    %v963 = vadd.f32 %v782, %v962
    %v964 = vpop.f32.mrf.mxu0
    %965 = vmatprep.mubr.bf16.mxu0 0
    %966 = vmatmul.mubr.bf16.gmra.mxu0 %v813
    %v967 = vpop.f32.mrf.mxu0
    %v968 = vadd.f32 %v782, %v967
    %v969 = vpop.f32.mrf.mxu0
    %v970 = vpop.f32.mrf.mxu0
    %v971 = vadd.f32 %v782, %v970
    %v972 = vpop.f32.mrf.mxu0
    %973 = vmatprep.mubr.bf16.mxu0 0
    %974 = vmatmul.mubr.bf16.gmra.mxu0 %v816
    %v975 = vpop.f32.mrf.mxu0
    %v976 = vadd.f32 %v782, %v975
    %v977 = vpop.f32.mrf.mxu0
    %v978 = vpop.f32.mrf.mxu0
    %v979 = vadd.f32 %v782, %v978
    %v980 = vpop.f32.mrf.mxu0
    %981 = vmatprep.mubr.bf16.mxu0 0
    %982 = vmatmul.mubr.bf16.gmra.mxu0 %v819
    %v983 = vpop.f32.mrf.mxu0
    %v984 = vadd.f32 %v782, %v983
    %v985 = vpop.f32.mrf.mxu0
    %v986 = vpop.f32.mrf.mxu0
    %v987 = vadd.f32 %v782, %v986
    %v988 = vpop.f32.mrf.mxu0
    %989 = vmatprep.mubr.bf16.mxu0 0
    %990 = vmatmul.mubr.bf16.gmra.mxu0 %v822
    %v991 = vpop.f32.mrf.mxu0
    %v992 = vadd.f32 %v782, %v991
    %v993 = vpop.f32.mrf.mxu0
    %v994 = vpop.f32.mrf.mxu0
    %v995 = vadd.f32 %v782, %v994
    %v996 = vpop.f32.mrf.mxu0
    %997 = vmatprep.mubr.bf16.mxu0 0
    %998 = vmatmul.mubr.bf16.gmra.mxu0 %v825
    %v999 = vpop.f32.mrf.mxu0
    %v1000 = vadd.f32 %v782, %v999
    %v1001 = vpop.f32.mrf.mxu0
    %v1002 = vpop.f32.mrf.mxu0
    %v1003 = vadd.f32 %v782, %v1002
    %v1004 = vpop.f32.mrf.mxu0
    %1005 = vmatprep.mubr.bf16.mxu0 0
    %1006 = vmatmul.mubr.bf16.gmra.mxu0 %v828
    %v1007 = vpop.f32.mrf.mxu0
    %v1008 = vadd.f32 %v782, %v1007
    %v1009 = vpop.f32.mrf.mxu0
    %v1010 = vpop.f32.mrf.mxu0
    %v1011 = vadd.f32 %v782, %v1010
    %v1012 = vpop.f32.mrf.mxu0
    %1013 = vmatprep.mubr.bf16.mxu0 0
    %1014 = vmatmul.mubr.bf16.gmra.mxu0 %v831
    %v1015 = vpop.f32.mrf.mxu0
    %v1016 = vadd.f32 %v782, %v1015
    %v1017 = vpop.f32.mrf.mxu0
    %v1018 = vpop.f32.mrf.mxu0
    %v1019 = vadd.f32 %v782, %v1018
    %v1020 = vpop.f32.mrf.mxu0
    %1021 = vmatprep.mubr.bf16.mxu0 0
    %1022 = vmatmul.mubr.bf16.gmra.mxu0 %v834
    %v1023 = vpop.f32.mrf.mxu0
    %v1024 = vadd.f32 %v782, %v1023
    %v1025 = vpop.f32.mrf.mxu0
    %v1026 = vpop.f32.mrf.mxu0
    %v1027 = vadd.f32 %v782, %v1026
    %v1028 = vpop.f32.mrf.mxu0
    %1029 = vmatprep.mubr.bf16.mxu0 0
    %1030 = vmatmul.mubr.bf16.gmra.mxu0 %v837
    %v1031 = vpop.f32.mrf.mxu0
    %v1032 = vadd.f32 %v782, %v1031
    %v1033 = vpop.f32.mrf.mxu0
    %v1034 = vpop.f32.mrf.mxu0
    %v1035 = vadd.f32 %v782, %v1034
    %v1036 = vpop.f32.mrf.mxu0
    %1037 = vmatprep.mubr.bf16.mxu0 0
    %1038 = vmatmul.mubr.bf16.gmra.mxu0 %v840
    %v1039 = vpop.f32.mrf.mxu0
    %v1040 = vadd.f32 %v782, %v1039
    %v1041 = vpop.f32.mrf.mxu0
    %v1042 = vpop.f32.mrf.mxu0
    %v1043 = vadd.f32 %v782, %v1042
    %v1044 = vpop.f32.mrf.mxu0
    %1045 = vmatprep.mubr.bf16.mxu0 0
    %1046 = vmatmul.mubr.bf16.gmra.mxu0 %v843
    %v1047 = vpop.f32.mrf.mxu0
    %v1048 = vadd.f32 %v782, %v1047
    %v1049 = vpop.f32.mrf.mxu0
    %v1050 = vpop.f32.mrf.mxu0
    %v1051 = vadd.f32 %v782, %v1050
    %v1052 = vpop.f32.mrf.mxu0
    %1053 = vmatprep.mubr.bf16.mxu0 0
    %1054 = vmatmul.mubr.bf16.gmra.mxu0 %v846
    %v1055 = vpop.f32.mrf.mxu0
    %v1056 = vadd.f32 %v782, %v1055
    %v1057 = vpop.f32.mrf.mxu0
    %v1058 = vpop.f32.mrf.mxu0
    %v1059 = vadd.f32 %v782, %v1058
    %v1060 = vpop.f32.mrf.mxu0
    %1061 = vmatprep.mubr.bf16.mxu0 0
    %1062 = vmatmul.mubr.bf16.gmra.mxu0 %v849
    %v1063 = vpop.f32.mrf.mxu0
    %v1064 = vadd.f32 %v782, %v1063
    %v1065 = vpop.f32.mrf.mxu0
    %v1066 = vpop.f32.mrf.mxu0
    %v1067 = vadd.f32 %v782, %v1066
    %v1068 = vpop.f32.mrf.mxu0
    %1069 = vmatprep.mubr.bf16.mxu0 0
    %1070 = vmatmul.mubr.bf16.gmra.mxu0 %v852
    %v1071 = vpop.f32.mrf.mxu0
    %v1072 = vadd.f32 %v782, %v1071
    %v1073 = vpop.f32.mrf.mxu0
    %v1074 = vpop.f32.mrf.mxu0
    %v1075 = vadd.f32 %v782, %v1074
    %v1076 = vpop.f32.mrf.mxu0
    %1077 = vmatprep.mubr.bf16.mxu0 0
    %1078 = vmatmul.mubr.bf16.gmra.mxu0 %v855
    %v1079 = vpop.f32.mrf.mxu0
    %v1080 = vadd.f32 %v782, %v1079
    %v1081 = vpop.f32.mrf.mxu0
    %v1082 = vpop.f32.mrf.mxu0
    %v1083 = vadd.f32 %v782, %v1082
    %v1084 = vpop.f32.mrf.mxu0
    %1085 = vmatprep.mubr.bf16.mxu0 0
    %1086 = vmatmul.mubr.bf16.gmra.mxu0 %v858
    %v1087 = vpop.f32.mrf.mxu0
    %v1088 = vadd.f32 %v782, %v1087
    %v1089 = vpop.f32.mrf.mxu0
    %v1090 = vpop.f32.mrf.mxu0
    %v1091 = vadd.f32 %v782, %v1090
    %v1092 = vpop.f32.mrf.mxu0
    %1093 = vmatprep.mubr.bf16.mxu0 0
    %1094 = vmatmul.mubr.bf16.gmra.mxu0 %v861
    %v1095 = vpop.f32.mrf.mxu0
    %v1096 = vadd.f32 %v782, %v1095
    %v1097 = vpop.f32.mrf.mxu0
    %v1098 = vpop.f32.mrf.mxu0
    %v1099 = vadd.f32 %v782, %v1098
    %v1100 = vpop.f32.mrf.mxu0
    %1101 = vmatprep.mubr.bf16.mxu0 0
    %1102 = vmatmul.mubr.bf16.gmra.mxu0 %v864
    %v1103 = vpop.f32.mrf.mxu0
    %v1104 = vadd.f32 %v782, %v1103
    %v1105 = vpop.f32.mrf.mxu0
    %v1106 = vpop.f32.mrf.mxu0
    %v1107 = vadd.f32 %v782, %v1106
    %v1108 = vpop.f32.mrf.mxu0
    %1109 = vmatprep.mubr.bf16.mxu0 0
    %1110 = vmatmul.mubr.bf16.gmra.mxu0 %v867
    %v1111 = vpop.f32.mrf.mxu0
    %v1112 = vadd.f32 %v782, %v1111
    %v1113 = vpop.f32.mrf.mxu0
    %v1114 = vpop.f32.mrf.mxu0
    %v1115 = vadd.f32 %v782, %v1114
    %v1116 = vpop.f32.mrf.mxu0
    %1117 = vmatprep.mubr.bf16.mxu0 0
    %1118 = vmatmul.mubr.bf16.gmra.mxu0 %v870
    %v1119 = vpop.f32.mrf.mxu0
    %v1120 = vadd.f32 %v782, %v1119
    %v1121 = vpop.f32.mrf.mxu0
    %v1122 = vpop.f32.mrf.mxu0
    %v1123 = vadd.f32 %v782, %v1122
    %v1124 = vpop.f32.mrf.mxu0
    %1125 = vmatprep.mubr.bf16.mxu0 0
    %1126 = vmatmul.mubr.bf16.gmra.mxu0 %v873
    %v1127 = vpop.f32.mrf.mxu0
    %v1128 = vadd.f32 %v782, %v1127
    %v1129 = vpop.f32.mrf.mxu0
    %v1130 = vpop.f32.mrf.mxu0
    %v1131 = vadd.f32 %v782, %v1130
    %v1132 = vpop.f32.mrf.mxu0
    %1133 = vmatprep.mubr.bf16.mxu0 0
    %1134 = vmatmul.mubr.bf16.gmra.mxu0 %v876
    %v1135 = vpop.f32.mrf.mxu0
    %v1136 = vadd.f32 %v782, %v1135
    %v1137 = vpop.f32.mrf.mxu0
    %v1138 = vpop.f32.mrf.mxu0
    %v1139 = vadd.f32 %v782, %v1138
    %v1140 = vpop.f32.mrf.mxu0
    %1141 = vmatprep.mubr.bf16.mxu0 0
    %1142 = vmatmul.mubr.bf16.gmra.mxu0 %v879
    %v1143 = vpop.f32.mrf.mxu0
    %v1144 = vadd.f32 %v782, %v1143
    %v1145 = vpop.f32.mrf.mxu0
    %v1146 = vpop.f32.mrf.mxu0
    %v1147 = vadd.f32 %v782, %v1146
    %v1148 = vpop.f32.mrf.mxu0
    %1149 = vmatprep.mubr.bf16.mxu0 0
    %1150 = vmatmul.mubr.bf16.gmra.mxu0 %v882
    %v1151 = vpop.f32.mrf.mxu0
    %v1152 = vadd.f32 %v782, %v1151
    %v1153 = vpop.f32.mrf.mxu0
    %v1154 = vpop.f32.mrf.mxu0
    %v1155 = vadd.f32 %v782, %v1154
    %v1156 = vpop.f32.mrf.mxu0
    %1157 = vmatprep.mubr.bf16.mxu0 0
    %1158 = vmatmul.mubr.bf16.gmra.mxu0 %v885
    %v1159 = vpop.f32.mrf.mxu0
    %v1160 = vadd.f32 %v782, %v1159
    %v1161 = vpop.f32.mrf.mxu0
    %v1162 = vpop.f32.mrf.mxu0
    %v1163 = vadd.f32 %v782, %v1162
    %v1164 = vpop.f32.mrf.mxu0
    %1165 = vmatprep.mubr.bf16.mxu0 0
    %1166 = vmatmul.mubr.bf16.gmra.mxu0 %v888
    %v1167 = vpop.f32.mrf.mxu0
    %v1168 = vadd.f32 %v782, %v1167
    %v1169 = vpop.f32.mrf.mxu0
    %v1170 = vpop.f32.mrf.mxu0
    %v1171 = vadd.f32 %v782, %v1170
    %v1172 = vpop.f32.mrf.mxu0
    %1173 = vmatprep.mubr.bf16.mxu0 0
    %1174 = vmatmul.mubr.bf16.gmra.mxu0 %v891
    %v1175 = vpop.f32.mrf.mxu0
    %v1176 = vadd.f32 %v782, %v1175
    %v1177 = vpop.f32.mrf.mxu0
    %v1178 = vpop.f32.mrf.mxu0
    %v1179 = vadd.f32 %v782, %v1178
    %v1180 = vpop.f32.mrf.mxu0
    %1181 = vdwg.mxu0
    %v1182 = vmax.f32 %v928, 0.0
    %v1183 = vmax.f32 %v931, 0.0
    %v1184 = vmax.f32 %v936, 0.0
    %v1185 = vmax.f32 %v939, 0.0
    %v1186 = vmax.f32 %v944, 0.0
    %v1187 = vmax.f32 %v947, 0.0
    %v1188 = vmax.f32 %v952, 0.0
    %v1189 = vmax.f32 %v955, 0.0
    %v1190 = vmax.f32 %v960, 0.0
    %v1191 = vmax.f32 %v963, 0.0
    %v1192 = vmax.f32 %v968, 0.0
    %v1193 = vmax.f32 %v971, 0.0
    %v1194 = vmax.f32 %v976, 0.0
    %v1195 = vmax.f32 %v979, 0.0
    %v1196 = vmax.f32 %v984, 0.0
    %v1197 = vmax.f32 %v987, 0.0
    %v1198 = vmax.f32 %v992, 0.0
    %v1199 = vmax.f32 %v995, 0.0
    %v1200 = vmax.f32 %v1000, 0.0
    %v1201 = vmax.f32 %v1003, 0.0
    %v1202 = vmax.f32 %v1008, 0.0
    %v1203 = vmax.f32 %v1011, 0.0
    %v1204 = vmax.f32 %v1016, 0.0
    %v1205 = vmax.f32 %v1019, 0.0
    %v1206 = vmax.f32 %v1024, 0.0
    %v1207 = vmax.f32 %v1027, 0.0
    %v1208 = vmax.f32 %v1032, 0.0
    %v1209 = vmax.f32 %v1035, 0.0
    %v1210 = vmax.f32 %v1040, 0.0
    %v1211 = vmax.f32 %v1043, 0.0
    %v1212 = vmax.f32 %v1048, 0.0
    %v1213 = vmax.f32 %v1051, 0.0
    %v1214 = vmax.f32 %v1056, 0.0
    %v1215 = vmax.f32 %v1059, 0.0
    %v1216 = vmax.f32 %v1064, 0.0
    %v1217 = vmax.f32 %v1067, 0.0
    %v1218 = vmax.f32 %v1072, 0.0
    %v1219 = vmax.f32 %v1075, 0.0
    %v1220 = vmax.f32 %v1080, 0.0
    %v1221 = vmax.f32 %v1083, 0.0
    %v1222 = vmax.f32 %v1088, 0.0
    %v1223 = vmax.f32 %v1091, 0.0
    %v1224 = vmax.f32 %v1096, 0.0
    %v1225 = vmax.f32 %v1099, 0.0
    %v1226 = vmax.f32 %v1104, 0.0
    %v1227 = vmax.f32 %v1107, 0.0
    %v1228 = vmax.f32 %v1112, 0.0
    %v1229 = vmax.f32 %v1115, 0.0
    %v1230 = vmax.f32 %v1120, 0.0
    %v1231 = vmax.f32 %v1123, 0.0
    %v1232 = vmax.f32 %v1128, 0.0
    %v1233 = vmax.f32 %v1131, 0.0
    %v1234 = vmax.f32 %v1136, 0.0
    %v1235 = vmax.f32 %v1139, 0.0
    %v1236 = vmax.f32 %v1144, 0.0
    %v1237 = vmax.f32 %v1147, 0.0
    %v1238 = vmax.f32 %v1152, 0.0
    %v1239 = vmax.f32 %v1155, 0.0
    %v1240 = vmax.f32 %v1160, 0.0
    %v1241 = vmax.f32 %v1163, 0.0
    %v1242 = vmax.f32 %v1168, 0.0
    %v1243 = vmax.f32 %v1171, 0.0
    %v1244 = vmax.f32 %v1176, 0.0
    %v1245 = vmax.f32 %v1179, 0.0
    %v1246 = vpack.c.bf16 %v1183, %v1182
    %v1247 = vpack.c.bf16 %v1185, %v1184
    %v1248 = vpack.c.bf16 %v1187, %v1186
    %v1249 = vpack.c.bf16 %v1189, %v1188
    %v1250 = vpack.c.bf16 %v1191, %v1190
    %v1251 = vpack.c.bf16 %v1193, %v1192
    %v1252 = vpack.c.bf16 %v1195, %v1194
    %v1253 = vpack.c.bf16 %v1197, %v1196
    %v1254 = vpack.c.bf16 %v1199, %v1198
    %v1255 = vpack.c.bf16 %v1201, %v1200
    %v1256 = vpack.c.bf16 %v1203, %v1202
    %v1257 = vpack.c.bf16 %v1205, %v1204
    %v1258 = vpack.c.bf16 %v1207, %v1206
    %v1259 = vpack.c.bf16 %v1209, %v1208
    %v1260 = vpack.c.bf16 %v1211, %v1210
    %v1261 = vpack.c.bf16 %v1213, %v1212
    %v1262 = vpack.c.bf16 %v1215, %v1214
    %v1263 = vpack.c.bf16 %v1217, %v1216
    %v1264 = vpack.c.bf16 %v1219, %v1218
    %v1265 = vpack.c.bf16 %v1221, %v1220
    %v1266 = vpack.c.bf16 %v1223, %v1222
    %v1267 = vpack.c.bf16 %v1225, %v1224
    %v1268 = vpack.c.bf16 %v1227, %v1226
    %v1269 = vpack.c.bf16 %v1229, %v1228
    %v1270 = vpack.c.bf16 %v1231, %v1230
    %v1271 = vpack.c.bf16 %v1233, %v1232
    %v1272 = vpack.c.bf16 %v1235, %v1234
    %v1273 = vpack.c.bf16 %v1237, %v1236
    %v1274 = vpack.c.bf16 %v1239, %v1238
    %v1275 = vpack.c.bf16 %v1241, %v1240
    %v1276 = vpack.c.bf16 %v1243, %v1242
    %v1277 = vpack.c.bf16 %v1245, %v1244
    %v1278 = vld [vmem:[%s5] sm:$0xf]
    %v1279 = vld [vmem:[%s5 + $0x4] sm:$0xf]
    %v1280 = vld [vmem:[%s6] sm:$0x1]
    %v1282 = vlaneseq
    %v1283 = vshrl.u32 %v1282, 7
    %v1284 = vsub.s32 0, %v1283
    %v1285 = vrot.slane %v1280, %v1284
    %v1289 = vunpack.c.l.b16 %v1278
    %v1290 = vunpack.c.l.b16 %v1279
    %v1291 = vpack.c.b16 %v1290, %v1289
    %vm1293 = vcmask 130048
    %v1295 = vsel %vm1293, %v1246, 0
    %v1298 = vsel %vm1293, %v1247, 0
    %v1301 = vsel %vm1293, %v1248, 0
    %v1304 = vsel %vm1293, %v1249, 0
    %v1307 = vsel %vm1293, %v1250, 0
    %v1310 = vsel %vm1293, %v1251, 0
    %v1313 = vsel %vm1293, %v1252, 0
    %v1316 = vsel %vm1293, %v1253, 0
    %v1319 = vsel %vm1293, %v1254, 0
    %v1322 = vsel %vm1293, %v1255, 0
    %v1325 = vsel %vm1293, %v1256, 0
    %v1328 = vsel %vm1293, %v1257, 0
    %v1331 = vsel %vm1293, %v1258, 0
    %v1334 = vsel %vm1293, %v1259, 0
    %v1337 = vsel %vm1293, %v1260, 0
    %v1340 = vsel %vm1293, %v1261, 0
    %v1343 = vsel %vm1293, %v1262, 0
    %v1346 = vsel %vm1293, %v1263, 0
    %v1349 = vsel %vm1293, %v1264, 0
    %v1352 = vsel %vm1293, %v1265, 0
    %v1355 = vsel %vm1293, %v1266, 0
    %v1358 = vsel %vm1293, %v1267, 0
    %v1361 = vsel %vm1293, %v1268, 0
    %v1364 = vsel %vm1293, %v1269, 0
    %v1367 = vsel %vm1293, %v1270, 0
    %v1370 = vsel %vm1293, %v1271, 0
    %v1373 = vsel %vm1293, %v1272, 0
    %v1376 = vsel %vm1293, %v1273, 0
    %v1379 = vsel %vm1293, %v1274, 0
    %v1382 = vsel %vm1293, %v1275, 0
    %v1385 = vsel %vm1293, %v1276, 0
    %v1388 = vsel %vm1293, %v1277, 0
    %1390 = vmatprep.subr.bf16.mxu0 0
    %1391 = vmatpush1.bf16.msra.mxu0 0
    %1392 = vmatprep.subr.bf16.mxu0 0
    %1393 = vmatpush1.bf16.msra.mxu0 0
    %1394 = vmatprep.subr.bf16.mxu0 0
    %1395 = vmatpush1.bf16.msra.mxu0 0
    %1396 = vmatprep.subr.bf16.mxu0 0
    %1397 = vmatpush1.bf16.msra.mxu0 0
    %1398 = vmatprep.subr.bf16.mxu0 0
    %1399 = vmatpush1.bf16.msra.mxu0 0
    %1400 = vmatprep.subr.bf16.mxu0 0
    %1401 = vmatpush1.bf16.msra.mxu0 0
    %1402 = vmatprep.subr.bf16.mxu0 0
    %1403 = vmatpush1.bf16.msra.mxu0 0
    %1404 = vmatprep.subr.bf16.mxu0 0
    %1405 = vmatpush1.bf16.msra.mxu0 %v1291
    %1406 = vmatprep.subr.bf16.mxu0 0
    %1407 = vmatpush2.bf16.msra.mxu0 0
    %1408 = vmatprep.subr.bf16.mxu0 0
    %1409 = vmatpush2.bf16.msra.mxu0 0
    %1410 = vmatprep.subr.bf16.mxu0 0
    %1411 = vmatpush2.bf16.msra.mxu0 0
    %1412 = vmatprep.subr.bf16.mxu0 0
    %1413 = vmatpush2.bf16.msra.mxu0 0
    %1414 = vmatprep.subr.bf16.mxu0 0
    %1415 = vmatpush2.bf16.msra.mxu0 0
    %1416 = vmatprep.subr.bf16.mxu0 0
    %1417 = vmatpush2.bf16.msra.mxu0 0
    %1418 = vmatprep.subr.bf16.mxu0 0
    %1419 = vmatpush2.bf16.msra.mxu0 0
    %1420 = vmatprep.subr.bf16.mxu0 0
    %1421 = vmatpush2.bf16.msra.mxu0 0
    %1422 = vmatprep.mubr.bf16.mxu0 0
    %1423 = vmatmul.mubr.bf16.gmra.mxu0 %v1295
    %v1424 = vpop.f32.mrf.mxu0
    %v1425 = vadd.f32 %v1285, %v1424
    %v1426 = vpop.f32.mrf.mxu0
    %v1427 = vpop.f32.mrf.mxu0
    %v1428 = vadd.f32 %v1285, %v1427
    %v1429 = vpop.f32.mrf.mxu0
    %1430 = vmatprep.mubr.bf16.mxu0 0
    %1431 = vmatmul.mubr.bf16.gmra.mxu0 %v1298
    %v1432 = vpop.f32.mrf.mxu0
    %v1433 = vadd.f32 %v1285, %v1432
    %v1434 = vpop.f32.mrf.mxu0
    %v1435 = vpop.f32.mrf.mxu0
    %v1436 = vadd.f32 %v1285, %v1435
    %v1437 = vpop.f32.mrf.mxu0
    %1438 = vmatprep.mubr.bf16.mxu0 0
    %1439 = vmatmul.mubr.bf16.gmra.mxu0 %v1301
    %v1440 = vpop.f32.mrf.mxu0
    %v1441 = vadd.f32 %v1285, %v1440
    %v1442 = vpop.f32.mrf.mxu0
    %v1443 = vpop.f32.mrf.mxu0
    %v1444 = vadd.f32 %v1285, %v1443
    %v1445 = vpop.f32.mrf.mxu0
    %1446 = vmatprep.mubr.bf16.mxu0 0
    %1447 = vmatmul.mubr.bf16.gmra.mxu0 %v1304
    %v1448 = vpop.f32.mrf.mxu0
    %v1449 = vadd.f32 %v1285, %v1448
    %v1450 = vpop.f32.mrf.mxu0
    %v1451 = vpop.f32.mrf.mxu0
    %v1452 = vadd.f32 %v1285, %v1451
    %v1453 = vpop.f32.mrf.mxu0
    %1454 = vmatprep.mubr.bf16.mxu0 0
    %1455 = vmatmul.mubr.bf16.gmra.mxu0 %v1307
    %v1456 = vpop.f32.mrf.mxu0
    %v1457 = vadd.f32 %v1285, %v1456
    %v1458 = vpop.f32.mrf.mxu0
    %v1459 = vpop.f32.mrf.mxu0
    %v1460 = vadd.f32 %v1285, %v1459
    %v1461 = vpop.f32.mrf.mxu0
    %1462 = vmatprep.mubr.bf16.mxu0 0
    %1463 = vmatmul.mubr.bf16.gmra.mxu0 %v1310
    %v1464 = vpop.f32.mrf.mxu0
    %v1465 = vadd.f32 %v1285, %v1464
    %v1466 = vpop.f32.mrf.mxu0
    %v1467 = vpop.f32.mrf.mxu0
    %v1468 = vadd.f32 %v1285, %v1467
    %v1469 = vpop.f32.mrf.mxu0
    %1470 = vmatprep.mubr.bf16.mxu0 0
    %1471 = vmatmul.mubr.bf16.gmra.mxu0 %v1313
    %v1472 = vpop.f32.mrf.mxu0
    %v1473 = vadd.f32 %v1285, %v1472
    %v1474 = vpop.f32.mrf.mxu0
    %v1475 = vpop.f32.mrf.mxu0
    %v1476 = vadd.f32 %v1285, %v1475
    %v1477 = vpop.f32.mrf.mxu0
    %1478 = vmatprep.mubr.bf16.mxu0 0
    %1479 = vmatmul.mubr.bf16.gmra.mxu0 %v1316
    %v1480 = vpop.f32.mrf.mxu0
    %v1481 = vadd.f32 %v1285, %v1480
    %v1482 = vpop.f32.mrf.mxu0
    %v1483 = vpop.f32.mrf.mxu0
    %v1484 = vadd.f32 %v1285, %v1483
    %v1485 = vpop.f32.mrf.mxu0
    %1486 = vmatprep.mubr.bf16.mxu0 0
    %1487 = vmatmul.mubr.bf16.gmra.mxu0 %v1319
    %v1488 = vpop.f32.mrf.mxu0
    %v1489 = vadd.f32 %v1285, %v1488
    %v1490 = vpop.f32.mrf.mxu0
    %v1491 = vpop.f32.mrf.mxu0
    %v1492 = vadd.f32 %v1285, %v1491
    %v1493 = vpop.f32.mrf.mxu0
    %1494 = vmatprep.mubr.bf16.mxu0 0
    %1495 = vmatmul.mubr.bf16.gmra.mxu0 %v1322
    %v1496 = vpop.f32.mrf.mxu0
    %v1497 = vadd.f32 %v1285, %v1496
    %v1498 = vpop.f32.mrf.mxu0
    %v1499 = vpop.f32.mrf.mxu0
    %v1500 = vadd.f32 %v1285, %v1499
    %v1501 = vpop.f32.mrf.mxu0
    %1502 = vmatprep.mubr.bf16.mxu0 0
    %1503 = vmatmul.mubr.bf16.gmra.mxu0 %v1325
    %v1504 = vpop.f32.mrf.mxu0
    %v1505 = vadd.f32 %v1285, %v1504
    %v1506 = vpop.f32.mrf.mxu0
    %v1507 = vpop.f32.mrf.mxu0
    %v1508 = vadd.f32 %v1285, %v1507
    %v1509 = vpop.f32.mrf.mxu0
    %1510 = vmatprep.mubr.bf16.mxu0 0
    %1511 = vmatmul.mubr.bf16.gmra.mxu0 %v1328
    %v1512 = vpop.f32.mrf.mxu0
    %v1513 = vadd.f32 %v1285, %v1512
    %v1514 = vpop.f32.mrf.mxu0
    %v1515 = vpop.f32.mrf.mxu0
    %v1516 = vadd.f32 %v1285, %v1515
    %v1517 = vpop.f32.mrf.mxu0
    %1518 = vmatprep.mubr.bf16.mxu0 0
    %1519 = vmatmul.mubr.bf16.gmra.mxu0 %v1331
    %v1520 = vpop.f32.mrf.mxu0
    %v1521 = vadd.f32 %v1285, %v1520
    %v1522 = vpop.f32.mrf.mxu0
    %v1523 = vpop.f32.mrf.mxu0
    %v1524 = vadd.f32 %v1285, %v1523
    %v1525 = vpop.f32.mrf.mxu0
    %1526 = vmatprep.mubr.bf16.mxu0 0
    %1527 = vmatmul.mubr.bf16.gmra.mxu0 %v1334
    %v1528 = vpop.f32.mrf.mxu0
    %v1529 = vadd.f32 %v1285, %v1528
    %v1530 = vpop.f32.mrf.mxu0
    %v1531 = vpop.f32.mrf.mxu0
    %v1532 = vadd.f32 %v1285, %v1531
    %v1533 = vpop.f32.mrf.mxu0
    %1534 = vmatprep.mubr.bf16.mxu0 0
    %1535 = vmatmul.mubr.bf16.gmra.mxu0 %v1337
    %v1536 = vpop.f32.mrf.mxu0
    %v1537 = vadd.f32 %v1285, %v1536
    %v1538 = vpop.f32.mrf.mxu0
    %v1539 = vpop.f32.mrf.mxu0
    %v1540 = vadd.f32 %v1285, %v1539
    %v1541 = vpop.f32.mrf.mxu0
    %1542 = vmatprep.mubr.bf16.mxu0 0
    %1543 = vmatmul.mubr.bf16.gmra.mxu0 %v1340
    %v1544 = vpop.f32.mrf.mxu0
    %v1545 = vadd.f32 %v1285, %v1544
    %v1546 = vpop.f32.mrf.mxu0
    %v1547 = vpop.f32.mrf.mxu0
    %v1548 = vadd.f32 %v1285, %v1547
    %v1549 = vpop.f32.mrf.mxu0
    %1550 = vmatprep.mubr.bf16.mxu0 0
    %1551 = vmatmul.mubr.bf16.gmra.mxu0 %v1343
    %v1552 = vpop.f32.mrf.mxu0
    %v1553 = vadd.f32 %v1285, %v1552
    %v1554 = vpop.f32.mrf.mxu0
    %v1555 = vpop.f32.mrf.mxu0
    %v1556 = vadd.f32 %v1285, %v1555
    %v1557 = vpop.f32.mrf.mxu0
    %1558 = vmatprep.mubr.bf16.mxu0 0
    %1559 = vmatmul.mubr.bf16.gmra.mxu0 %v1346
    %v1560 = vpop.f32.mrf.mxu0
    %v1561 = vadd.f32 %v1285, %v1560
    %v1562 = vpop.f32.mrf.mxu0
    %v1563 = vpop.f32.mrf.mxu0
    %v1564 = vadd.f32 %v1285, %v1563
    %v1565 = vpop.f32.mrf.mxu0
    %1566 = vmatprep.mubr.bf16.mxu0 0
    %1567 = vmatmul.mubr.bf16.gmra.mxu0 %v1349
    %v1568 = vpop.f32.mrf.mxu0
    %v1569 = vadd.f32 %v1285, %v1568
    %v1570 = vpop.f32.mrf.mxu0
    %v1571 = vpop.f32.mrf.mxu0
    %v1572 = vadd.f32 %v1285, %v1571
    %v1573 = vpop.f32.mrf.mxu0
    %1574 = vmatprep.mubr.bf16.mxu0 0
    %1575 = vmatmul.mubr.bf16.gmra.mxu0 %v1352
    %v1576 = vpop.f32.mrf.mxu0
    %v1577 = vadd.f32 %v1285, %v1576
    %v1578 = vpop.f32.mrf.mxu0
    %v1579 = vpop.f32.mrf.mxu0
    %v1580 = vadd.f32 %v1285, %v1579
    %v1581 = vpop.f32.mrf.mxu0
    %1582 = vmatprep.mubr.bf16.mxu0 0
    %1583 = vmatmul.mubr.bf16.gmra.mxu0 %v1355
    %v1584 = vpop.f32.mrf.mxu0
    %v1585 = vadd.f32 %v1285, %v1584
    %v1586 = vpop.f32.mrf.mxu0
    %v1587 = vpop.f32.mrf.mxu0
    %v1588 = vadd.f32 %v1285, %v1587
    %v1589 = vpop.f32.mrf.mxu0
    %1590 = vmatprep.mubr.bf16.mxu0 0
    %1591 = vmatmul.mubr.bf16.gmra.mxu0 %v1358
    %v1592 = vpop.f32.mrf.mxu0
    %v1593 = vadd.f32 %v1285, %v1592
    %v1594 = vpop.f32.mrf.mxu0
    %v1595 = vpop.f32.mrf.mxu0
    %v1596 = vadd.f32 %v1285, %v1595
    %v1597 = vpop.f32.mrf.mxu0
    %1598 = vmatprep.mubr.bf16.mxu0 0
    %1599 = vmatmul.mubr.bf16.gmra.mxu0 %v1361
    %v1600 = vpop.f32.mrf.mxu0
    %v1601 = vadd.f32 %v1285, %v1600
    %v1602 = vpop.f32.mrf.mxu0
    %v1603 = vpop.f32.mrf.mxu0
    %v1604 = vadd.f32 %v1285, %v1603
    %v1605 = vpop.f32.mrf.mxu0
    %1606 = vmatprep.mubr.bf16.mxu0 0
    %1607 = vmatmul.mubr.bf16.gmra.mxu0 %v1364
    %v1608 = vpop.f32.mrf.mxu0
    %v1609 = vadd.f32 %v1285, %v1608
    %v1610 = vpop.f32.mrf.mxu0
    %v1611 = vpop.f32.mrf.mxu0
    %v1612 = vadd.f32 %v1285, %v1611
    %v1613 = vpop.f32.mrf.mxu0
    %1614 = vmatprep.mubr.bf16.mxu0 0
    %1615 = vmatmul.mubr.bf16.gmra.mxu0 %v1367
    %v1616 = vpop.f32.mrf.mxu0
    %v1617 = vadd.f32 %v1285, %v1616
    %v1618 = vpop.f32.mrf.mxu0
    %v1619 = vpop.f32.mrf.mxu0
    %v1620 = vadd.f32 %v1285, %v1619
    %v1621 = vpop.f32.mrf.mxu0
    %1622 = vmatprep.mubr.bf16.mxu0 0
    %1623 = vmatmul.mubr.bf16.gmra.mxu0 %v1370
    %v1624 = vpop.f32.mrf.mxu0
    %v1625 = vadd.f32 %v1285, %v1624
    %v1626 = vpop.f32.mrf.mxu0
    %v1627 = vpop.f32.mrf.mxu0
    %v1628 = vadd.f32 %v1285, %v1627
    %v1629 = vpop.f32.mrf.mxu0
    %1630 = vmatprep.mubr.bf16.mxu0 0
    %1631 = vmatmul.mubr.bf16.gmra.mxu0 %v1373
    %v1632 = vpop.f32.mrf.mxu0
    %v1633 = vadd.f32 %v1285, %v1632
    %v1634 = vpop.f32.mrf.mxu0
    %v1635 = vpop.f32.mrf.mxu0
    %v1636 = vadd.f32 %v1285, %v1635
    %v1637 = vpop.f32.mrf.mxu0
    %1638 = vmatprep.mubr.bf16.mxu0 0
    %1639 = vmatmul.mubr.bf16.gmra.mxu0 %v1376
    %v1640 = vpop.f32.mrf.mxu0
    %v1641 = vadd.f32 %v1285, %v1640
    %v1642 = vpop.f32.mrf.mxu0
    %v1643 = vpop.f32.mrf.mxu0
    %v1644 = vadd.f32 %v1285, %v1643
    %v1645 = vpop.f32.mrf.mxu0
    %1646 = vmatprep.mubr.bf16.mxu0 0
    %1647 = vmatmul.mubr.bf16.gmra.mxu0 %v1379
    %v1648 = vpop.f32.mrf.mxu0
    %v1649 = vadd.f32 %v1285, %v1648
    %v1650 = vpop.f32.mrf.mxu0
    %v1651 = vpop.f32.mrf.mxu0
    %v1652 = vadd.f32 %v1285, %v1651
    %v1653 = vpop.f32.mrf.mxu0
    %1654 = vmatprep.mubr.bf16.mxu0 0
    %1655 = vmatmul.mubr.bf16.gmra.mxu0 %v1382
    %v1656 = vpop.f32.mrf.mxu0
    %v1657 = vadd.f32 %v1285, %v1656
    %v1658 = vpop.f32.mrf.mxu0
    %v1659 = vpop.f32.mrf.mxu0
    %v1660 = vadd.f32 %v1285, %v1659
    %v1661 = vpop.f32.mrf.mxu0
    %1662 = vmatprep.mubr.bf16.mxu0 0
    %1663 = vmatmul.mubr.bf16.gmra.mxu0 %v1385
    %v1664 = vpop.f32.mrf.mxu0
    %v1665 = vadd.f32 %v1285, %v1664
    %v1666 = vpop.f32.mrf.mxu0
    %v1667 = vpop.f32.mrf.mxu0
    %v1668 = vadd.f32 %v1285, %v1667
    %v1669 = vpop.f32.mrf.mxu0
    %1670 = vmatprep.mubr.bf16.mxu0 0
    %1671 = vmatmul.mubr.bf16.gmra.mxu0 %v1388
    %v1672 = vpop.f32.mrf.mxu0
    %v1673 = vadd.f32 %v1285, %v1672
    %v1674 = vpop.f32.mrf.mxu0
    %v1675 = vpop.f32.mrf.mxu0
    %v1676 = vadd.f32 %v1285, %v1675
    %v1677 = vpop.f32.mrf.mxu0
    %1678 = vdwg.mxu0
    %1679 = vst [vmem:[#allocation2] sm:$0xff] %v1425
    %1680 = vst [vmem:[#allocation2 + $0x8] sm:$0xff] %v1428
    %1681 = vst [vmem:[#allocation2 + $0x10] sm:$0xff] %v1433
    %1682 = vst [vmem:[#allocation2 + $0x18] sm:$0xff] %v1436
    %1683 = vst [vmem:[#allocation2 + $0x20] sm:$0xff] %v1441
    %1684 = vst [vmem:[#allocation2 + $0x28] sm:$0xff] %v1444
    %1685 = vst [vmem:[#allocation2 + $0x30] sm:$0xff] %v1449
    %1686 = vst [vmem:[#allocation2 + $0x38] sm:$0xff] %v1452
    %1687 = vst [vmem:[#allocation2 + $0x40] sm:$0xff] %v1457
    %1688 = vst [vmem:[#allocation2 + $0x48] sm:$0xff] %v1460
    %1689 = vst [vmem:[#allocation2 + $0x50] sm:$0xff] %v1465
    %1690 = vst [vmem:[#allocation2 + $0x58] sm:$0xff] %v1468
    %1691 = vst [vmem:[#allocation2 + $0x60] sm:$0xff] %v1473
    %1692 = vst [vmem:[#allocation2 + $0x68] sm:$0xff] %v1476
    %1693 = vst [vmem:[#allocation2 + $0x70] sm:$0xff] %v1481
    %1694 = vst [vmem:[#allocation2 + $0x78] sm:$0xff] %v1484
    %1695 = vst [vmem:[#allocation2 + $0x80] sm:$0xff] %v1489
    %1696 = vst [vmem:[#allocation2 + $0x88] sm:$0xff] %v1492
    %1697 = vst [vmem:[#allocation2 + $0x90] sm:$0xff] %v1497
    %1698 = vst [vmem:[#allocation2 + $0x98] sm:$0xff] %v1500
    %1699 = vst [vmem:[#allocation2 + $0xa0] sm:$0xff] %v1505
    %1700 = vst [vmem:[#allocation2 + $0xa8] sm:$0xff] %v1508
    %1701 = vst [vmem:[#allocation2 + $0xb0] sm:$0xff] %v1513
    %1702 = vst [vmem:[#allocation2 + $0xb8] sm:$0xff] %v1516
    %1703 = vst [vmem:[#allocation2 + $0xc0] sm:$0xff] %v1521
    %1704 = vst [vmem:[#allocation2 + $0xc8] sm:$0xff] %v1524
    %1705 = vst [vmem:[#allocation2 + $0xd0] sm:$0xff] %v1529
    %1706 = vst [vmem:[#allocation2 + $0xd8] sm:$0xff] %v1532
    %1707 = vst [vmem:[#allocation2 + $0xe0] sm:$0xff] %v1537
    %1708 = vst [vmem:[#allocation2 + $0xe8] sm:$0xff] %v1540
    %1709 = vst [vmem:[#allocation2 + $0xf0] sm:$0xff] %v1545
    %1710 = vst [vmem:[#allocation2 + $0xf8] sm:$0xff] %v1548
    %1711 = vst [vmem:[#allocation2 + $0x100] sm:$0xff] %v1553
    %1712 = vst [vmem:[#allocation2 + $0x108] sm:$0xff] %v1556
    %1713 = vst [vmem:[#allocation2 + $0x110] sm:$0xff] %v1561
    %1714 = vst [vmem:[#allocation2 + $0x118] sm:$0xff] %v1564
    %1715 = vst [vmem:[#allocation2 + $0x120] sm:$0xff] %v1569
    %1716 = vst [vmem:[#allocation2 + $0x128] sm:$0xff] %v1572
    %1717 = vst [vmem:[#allocation2 + $0x130] sm:$0xff] %v1577
    %1718 = vst [vmem:[#allocation2 + $0x138] sm:$0xff] %v1580
    %1719 = vst [vmem:[#allocation2 + $0x140] sm:$0xff] %v1585
    %1720 = vst [vmem:[#allocation2 + $0x148] sm:$0xff] %v1588
    %1721 = vst [vmem:[#allocation2 + $0x150] sm:$0xff] %v1593
    %1722 = vst [vmem:[#allocation2 + $0x158] sm:$0xff] %v1596
    %1723 = vst [vmem:[#allocation2 + $0x160] sm:$0xff] %v1601
    %1724 = vst [vmem:[#allocation2 + $0x168] sm:$0xff] %v1604
    %1725 = vst [vmem:[#allocation2 + $0x170] sm:$0xff] %v1609
    %1726 = vst [vmem:[#allocation2 + $0x178] sm:$0xff] %v1612
    %1727 = vst [vmem:[#allocation2 + $0x180] sm:$0xff] %v1617
    %1728 = vst [vmem:[#allocation2 + $0x188] sm:$0xff] %v1620
    %1729 = vst [vmem:[#allocation2 + $0x190] sm:$0xff] %v1625
    %1730 = vst [vmem:[#allocation2 + $0x198] sm:$0xff] %v1628
    %1731 = vst [vmem:[#allocation2 + $0x1a0] sm:$0xff] %v1633
    %1732 = vst [vmem:[#allocation2 + $0x1a8] sm:$0xff] %v1636
    %1733 = vst [vmem:[#allocation2 + $0x1b0] sm:$0xff] %v1641
    %1734 = vst [vmem:[#allocation2 + $0x1b8] sm:$0xff] %v1644
    %1735 = vst [vmem:[#allocation2 + $0x1c0] sm:$0xff] %v1649
    %1736 = vst [vmem:[#allocation2 + $0x1c8] sm:$0xff] %v1652
    %1737 = vst [vmem:[#allocation2 + $0x1d0] sm:$0xff] %v1657
    %1738 = vst [vmem:[#allocation2 + $0x1d8] sm:$0xff] %v1660
    %1739 = vst [vmem:[#allocation2 + $0x1e0] sm:$0xff] %v1665
    %1740 = vst [vmem:[#allocation2 + $0x1e8] sm:$0xff] %v1668
    %1741 = vst [vmem:[#allocation2 + $0x1f0] sm:$0xff] %v1673
    %1742 = vst [vmem:[#allocation2 + $0x1f8] sm:$0xff] %v1676
    // Predicated region
    $region30: #{tpu_custom_call.1} parent=1 // pred_check
      _
    $region31: #{tpu_custom_call.1} parent=1 // pred_check_branch
      %1744 = sbr.rel (0) target = $region33
    $region32: #{tpu_custom_call.1} parent=1 // pred_region
      %s1746 = ssub.s32 8192, 8192
      %1747 = vsyncadd [#allocation3], %s1746
      %s1748 = sshll.u32 [#allocation2], 4
      %s1749 = int_to_ptr.vmem [resolvable:$true] %s1748
      %1754 = dma.vmem_to_hbm [thread:$0]  %s1749, 8192, %s7, [#allocation3], 128, 128, 8
    $region33: #{tpu_custom_call.1} parent=1 // pred_fallthru
      _
    // Predicated region
    $region34: #{tpu_custom_call.1} parent=1 // pred_check
      _
    $region35: #{tpu_custom_call.1} parent=1 // pred_check_branch
      %1756 = sbr.rel (0) target = $region37
    $region36: #{tpu_custom_call.1} parent=1 // pred_region
      %1757 = dma.done [#allocation3], 8192
    $region37: #{tpu_custom_call.1} parent=1 // pred_fallthru
      _
    %1758 = vsyncpa [#allocation3], 1

</llo_original>
